<compile_context>
chip_gen: v7x
topology: tpu7x:2x2x1
jax: 0.10.0
libtpu: 0.0.40
codegen_flags: <defaults>
</compile_context>

<pallas_src>
import functools

import jax
import jax.numpy as jnp
from jax.experimental import pallas as pl
from jax.experimental.pallas import tpu as pltpu

LANE = 128  # padded hidden width (c1, m, c2 all <= 128 in this module)


def _round_up(x, m):
    return ((x + m - 1) // m) * m


def _fit_net_kernel(num_mid, pack, xp_ref, wmid_ref, aux_ref, o_ref):
    """Fused MLP forward for one batch tile (transposed, batch-packed layout).

    xp_ref  : (3*pack, tile_q) f32   packed inputs; row g*3+k = feature k of group g
    wmid_ref: (3, LANE, LANE)  bf16  block-diagonal W^T for mid layers 1/2/3
    aux_ref : (LANE, 3*pack+6) f32   first-layer cols, biases, out weight, out bias
    o_ref   : (pack, tile_q)   f32   lane-dense output block
    """
    nw = 3 * pack
    gs = LANE // pack

    xp = xp_ref[...]
    aux = aux_ref[...]

    # Hoist every reused operand exactly once (JAX does not CSE repeated
    # ref loads / slice+broadcasts inside unrolled loops).
    b_in = aux[:, nw + 0:nw + 1]
    b1 = aux[:, nw + 1:nw + 2]
    b2 = aux[:, nw + 2:nw + 3]
    b3 = aux[:, nw + 3:nw + 4]
    w_out = aux[:, nw + 4:nw + 5]
    b_out = aux[0:1, nw + 5:nw + 6]
    w1 = wmid_ref[0]
    w2 = wmid_ref[1]
    w3 = wmid_ref[2]

    # ---- in_layer + ReLU: K=3 per sample group is far too thin for the MXU;
    #      3*pack rank-1 (column x row) VPU updates emit the packed layout
    #      directly (aux column g*3+k is zero outside group g's sublanes).
    h = b_in
    for r in range(nw):
        h = h + aux[:, r:r + 1] * xp[r:r + 1, :]
    h = jnp.maximum(h, 0.0)                                 # (LANE, tile_q) f32

    def layer(w, hh, bias):
        acc = jnp.dot(w, hh.astype(jnp.bfloat16),
                      preferred_element_type=jnp.float32)
        return jnp.maximum(acc + bias, 0.0)

    # ---- mid_layer1 + ReLU
    h = layer(w1, h, b1)

    # ---- num x (mid_layer2 + ReLU)   (serially dependent chain)
    if num_mid <= 8:
        for _ in range(num_mid):
            h = layer(w2, h, b2)
    else:
        h = jax.lax.fori_loop(0, num_mid, lambda _, hh: layer(w2, hh, b2), h,
                              unroll=4)

    # ---- mid_layer3 + ReLU
    h = layer(w3, h, b3)

    # ---- out_layer (no ReLU): per-group segmented sublane reduction ->
    #      result is already lane-dense (pack, tile_q).
    hw = h * w_out
    rows = [jnp.sum(hw[g * gs:(g + 1) * gs, :], axis=0, keepdims=True)
            for g in range(pack)]
    y = rows[0] if pack == 1 else jnp.concatenate(rows, axis=0)
    o_ref[...] = (y + b_out).astype(o_ref.dtype)


def prepare_params(p):
    """Pad / transpose / block-diagonal-pack params once (out of the forward).

    Returns (wmid, aux, pack)."""
    c1 = p["w_in"].shape[1]
    m = p["w1"].shape[1]
    c2 = p["w3"].shape[1]
    width = max(c1, c2, m)
    assert width <= LANE, "hidden widths > 128 not supported"
    # TODO(synk): widths > 128 would need multi-tile hidden dims.
    gs = next(g for g in (8, 16, 32, 64, 128) if g >= width)   # group size
    pack = LANE // gs            # samples packed per 128-lane column

    eye = jnp.eye(pack, dtype=jnp.float32)

    def block_diag_t(w):         # w: (fan_in, fan_out) -> block-diag W^T, bf16
        blk = jnp.zeros((gs, gs), jnp.float32)
        blk = blk.at[:w.shape[1], :w.shape[0]].set(w.T)
        return jnp.kron(eye, blk).astype(jnp.bfloat16)

    wmid = jnp.stack([block_diag_t(p["w1"]), block_diag_t(p["w2"]),
                      block_diag_t(p["w3"])], axis=0)          # (3,128,128) bf16

    def rep(v):                  # replicate a per-group column into every group
        col = jnp.zeros((LANE,), jnp.float32)
        for g in range(pack):
            col = col.at[g * gs:g * gs + v.shape[0]].set(v)
        return col

    nw = 3 * pack
    aux = jnp.zeros((LANE, nw + 6), jnp.float32)
    for g in range(pack):        # first-layer weight columns, one per (group, k)
        for k in range(3):
            aux = aux.at[g * gs:g * gs + c1, g * 3 + k].set(p["w_in"][k, :])
    aux = aux.at[:, nw + 0].set(rep(p["b_in"]))
    aux = aux.at[:, nw + 1].set(rep(p["b1"]))
    aux = aux.at[:, nw + 2].set(rep(p["b2"]))
    aux = aux.at[:, nw + 3].set(rep(p["b3"]))
    aux = aux.at[:, nw + 4].set(rep(p["w_out"][:, 0]))
    aux = aux.at[0, nw + 5].set(p["b_out"][0])
    return wmid, aux, pack


def fit_net_forward(x, wmid, aux, num_mid, pack, *, tile_b=None):
    """x: (B, 3) float32.  (wmid, aux, pack) from prepare_params.  -> (B, 1)."""
    B, F = x.shape
    assert F == 3, "Fit_net takes 3 input features"
    x = x.astype(jnp.float32)

    min_tile = pack * LANE       # keeps tile_q = tile_b // pack a multiple of 128
    if tile_b is None:
        # Big default tile amortizes per-grid-step overhead; shrink for small
        # batches but keep >= 2 grid steps when B allows (v7x has 2 TCs).
        tile_b = max(min_tile, 2048)
        while tile_b > min_tile and _round_up(B, min_tile) < 2 * tile_b:
            tile_b //= 2
    tile_b = max(min_tile, _round_up(tile_b, min_tile))

    n_steps = pl.cdiv(B, tile_b)
    if n_steps > 1 and n_steps % 2 == 1:
        # Prefer an even step count for the two v7x TensorCores; shrinking
        # tile_b to hit it never increases the total padded work.
        tile_b = max(min_tile, _round_up(pl.cdiv(B, n_steps + 1), min_tile))
        n_steps = pl.cdiv(B, tile_b)
    tile_q = tile_b // pack
    Bp = n_steps * tile_b

    # Pad the batch and pack `pack` samples per 128-lane column:
    #   sample  i*tile_b + g*tile_q + j   ->   xp[g*3 + k, i*tile_q + j]
    xpad = x if Bp == B else jnp.zeros((Bp, 3), jnp.float32).at[:B].set(x)
    xp = (xpad.reshape(n_steps, pack, tile_q, 3)
          .transpose(1, 3, 0, 2)
          .reshape(pack * 3, n_steps * tile_q))

    kernel = functools.partial(_fit_net_kernel, num_mid, pack)
    ncols = aux.shape[1]

    out = pl.pallas_call(
        kernel,
        out_shape=jax.ShapeDtypeStruct((pack, n_steps * tile_q), jnp.float32),
        grid_spec=pltpu.PrefetchScalarGridSpec(
            num_scalar_prefetch=0,
            grid=(n_steps,),
            in_specs=[
                # packed input: lane-dense, sublane dim (3*pack) = full array dim
                pl.BlockSpec((3 * pack, tile_q), lambda i: (0, i)),
                # packed block-diagonal hidden weights, grid-invariant
                pl.BlockSpec((3, LANE, LANE), lambda i: (0, 0, 0)),
                # packed biases / first & last layer params, grid-invariant
                pl.BlockSpec((LANE, ncols), lambda i: (0, 0)),
            ],
            out_specs=pl.BlockSpec((pack, tile_q), lambda i: (0, i)),
        ),
        compiler_params=pltpu.CompilerParams(
            dimension_semantics=("parallel",),
            vmem_limit_bytes=32 * 1024 * 1024,
        ),
    )(xp, wmid, aux)

    # Un-pack: out[g, i*tile_q + j] is sample i*tile_b + g*tile_q + j.
    y = (out.reshape(pack, n_steps, tile_q)
            .transpose(1, 0, 2)
            .reshape(Bp, 1))[:B]
    return y


def init_params(key, c1, c2, m):
    """Deterministic init mimicking PyTorch Linear default (U[-1/sqrt(fan_in), ...])."""
    def lin(k, fan_in, fan_out):
        kw, kb = jax.random.split(k)
        bound = 1.0 / jnp.sqrt(fan_in)
        w = jax.random.uniform(kw, (fan_in, fan_out), jnp.float32, -bound, bound)
        b = jax.random.uniform(kb, (fan_out,), jnp.float32, -bound, bound)
        return w, b

    keys = jax.random.split(key, 5)
    w_in, b_in = lin(keys[0], 3, c1)
    w1, b1 = lin(keys[1], c1, m)
    w2, b2 = lin(keys[2], m, m)
    w3, b3 = lin(keys[3], m, c2)
    w_out, b_out = lin(keys[4], c2, 1)
    return dict(w_in=w_in, b_in=b_in, w1=w1, b1=b1, w2=w2, b2=b2,
                w3=w3, b3=b3, w_out=w_out, b_out=b_out)


def fit_net_reference(x, p, num_mid):
    """Pure-JAX (f32) reference of the PyTorch forward."""
    h = jnp.maximum(x @ p["w_in"] + p["b_in"], 0.0)
    h = jnp.maximum(h @ p["w1"] + p["b1"], 0.0)
    for _ in range(num_mid):
        h = jnp.maximum(h @ p["w2"] + p["b2"], 0.0)
    h = jnp.maximum(h @ p["w3"] + p["b3"], 0.0)
    return h @ p["w_out"] + p["b_out"]


if __name__ == "__main__":
    # Small, module-consistent sizes: c1=16, c2=16, m=32, num=3, batch=64.
    c1, c2, m, num = 16, 16, 32, 3
    B = 64

    key = jax.random.PRNGKey(0)
    kx, kp = jax.random.split(key)
    x = jax.random.normal(kx, (B, 3), jnp.float32)
    params = init_params(kp, c1, c2, m)

    # Pad/transpose/pack parameters once (hoisted out of the forward path).
    wmid, aux, pack = prepare_params(params)

    y = fit_net_forward(x, wmid, aux, num, pack)
    y = jax.block_until_ready(y)

    y_ref = fit_net_reference(x, params, num)
    assert y.shape == (B, 1)
    # Tolerance relaxed relative to pure f32 because hidden matmuls use bf16
    # weights/activations (accumulation stays f32).
    err = jnp.max(jnp.abs(y - y_ref))
    assert jnp.allclose(y, y_ref, atol=3e-2, rtol=3e-2), \
        f"Pallas kernel mismatch vs reference (max abs diff {err})"

    print("KERNEL_OK")
</pallas_src>

<mosaic_0001>
module attributes {stable_mosaic.version = 11 : i64} {
  func.func @_fit_net_kernel(%arg0: i32, %arg1: memref<12x128xf32, #tpu.memory_space<vmem>>, %arg2: memref<3x128x128xbf16, #tpu.memory_space<vmem>>, %arg3: memref<128x18xf32, #tpu.memory_space<vmem>>, %arg4: memref<4x128xf32, #tpu.memory_space<vmem>>) attributes {dimension_semantics = [#tpu.dimension_semantics<parallel>], iteration_bounds = array<i64: 1>, scalar_prefetch = 0 : i64, scratch_operands = 0 : i64, tpu.core_type = #tpu.core_type<tc>, window_params = [{transform_indices = @transform_0, window_bounds = array<i64: 12, 128>}, {pipeline_mode = #tpu.pipeline_mode<synchronous>, transform_indices = @transform_1, window_bounds = array<i64: 3, 128, 128>}, {pipeline_mode = #tpu.pipeline_mode<synchronous>, transform_indices = @transform_2, window_bounds = array<i64: 128, 18>}, {transform_indices = @transform_3, window_bounds = array<i64: 4, 128>}]} {
    %c0 = arith.constant 0 : index
    %c0_0 = arith.constant 0 : index
    %0 = vector.load %arg1[%c0, %c0_0] : memref<12x128xf32, #tpu.memory_space<vmem>>, vector<12x128xf32>
    %c0_1 = arith.constant 0 : index
    %c0_2 = arith.constant 0 : index
    %1 = vector.load %arg3[%c0_1, %c0_2] : memref<128x18xf32, #tpu.memory_space<vmem>>, vector<128x18xf32>
    %2 = vector.extract_strided_slice %1 {offsets = [0, 12], sizes = [128, 1], strides = [1, 1]} : vector<128x18xf32> to vector<128x1xf32>
    %3 = vector.extract_strided_slice %1 {offsets = [0, 13], sizes = [128, 1], strides = [1, 1]} : vector<128x18xf32> to vector<128x1xf32>
    %4 = vector.extract_strided_slice %1 {offsets = [0, 14], sizes = [128, 1], strides = [1, 1]} : vector<128x18xf32> to vector<128x1xf32>
    %5 = vector.extract_strided_slice %1 {offsets = [0, 15], sizes = [128, 1], strides = [1, 1]} : vector<128x18xf32> to vector<128x1xf32>
    %6 = vector.extract_strided_slice %1 {offsets = [0, 16], sizes = [128, 1], strides = [1, 1]} : vector<128x18xf32> to vector<128x1xf32>
    %7 = vector.extract_strided_slice %1 {offsets = [0, 17], sizes = [1, 1], strides = [1, 1]} : vector<128x18xf32> to vector<1x1xf32>
    %c0_3 = arith.constant 0 : index
    %c0_4 = arith.constant 0 : index
    %c0_5 = arith.constant 0 : index
    %8 = vector.load %arg2[%c0_3, %c0_4, %c0_5] : memref<3x128x128xbf16, #tpu.memory_space<vmem>>, vector<1x128x128xbf16>
    %9 = vector.shape_cast %8 : vector<1x128x128xbf16> to vector<128x128xbf16>
    %c1 = arith.constant 1 : index
    %c0_6 = arith.constant 0 : index
    %c0_7 = arith.constant 0 : index
    %10 = vector.load %arg2[%c1, %c0_6, %c0_7] : memref<3x128x128xbf16, #tpu.memory_space<vmem>>, vector<1x128x128xbf16>
    %11 = vector.shape_cast %10 : vector<1x128x128xbf16> to vector<128x128xbf16>
    %c2 = arith.constant 2 : index
    %c0_8 = arith.constant 0 : index
    %c0_9 = arith.constant 0 : index
    %12 = vector.load %arg2[%c2, %c0_8, %c0_9] : memref<3x128x128xbf16, #tpu.memory_space<vmem>>, vector<1x128x128xbf16>
    %13 = vector.shape_cast %12 : vector<1x128x128xbf16> to vector<128x128xbf16>
    %14 = vector.extract_strided_slice %1 {offsets = [0, 0], sizes = [128, 1], strides = [1, 1]} : vector<128x18xf32> to vector<128x1xf32>
    %15 = vector.extract_strided_slice %0 {offsets = [0, 0], sizes = [1, 128], strides = [1, 1]} : vector<12x128xf32> to vector<1x128xf32>
    %16 = vector.broadcast %14 : vector<128x1xf32> to vector<128x128xf32>
    %17 = vector.broadcast %15 : vector<1x128xf32> to vector<128x128xf32>
    %18 = arith.mulf %16, %17 : vector<128x128xf32>
    %19 = vector.broadcast %2 : vector<128x1xf32> to vector<128x128xf32>
    %20 = arith.addf %19, %18 : vector<128x128xf32>
    %21 = vector.extract_strided_slice %1 {offsets = [0, 1], sizes = [128, 1], strides = [1, 1]} : vector<128x18xf32> to vector<128x1xf32>
    %22 = vector.extract_strided_slice %0 {offsets = [1, 0], sizes = [1, 128], strides = [1, 1]} : vector<12x128xf32> to vector<1x128xf32>
    %23 = vector.broadcast %21 : vector<128x1xf32> to vector<128x128xf32>
    %24 = vector.broadcast %22 : vector<1x128xf32> to vector<128x128xf32>
    %25 = arith.mulf %23, %24 : vector<128x128xf32>
    %26 = arith.addf %20, %25 : vector<128x128xf32>
    %27 = vector.extract_strided_slice %1 {offsets = [0, 2], sizes = [128, 1], strides = [1, 1]} : vector<128x18xf32> to vector<128x1xf32>
    %28 = vector.extract_strided_slice %0 {offsets = [2, 0], sizes = [1, 128], strides = [1, 1]} : vector<12x128xf32> to vector<1x128xf32>
    %29 = vector.broadcast %27 : vector<128x1xf32> to vector<128x128xf32>
    %30 = vector.broadcast %28 : vector<1x128xf32> to vector<128x128xf32>
    %31 = arith.mulf %29, %30 : vector<128x128xf32>
    %32 = arith.addf %26, %31 : vector<128x128xf32>
    %33 = vector.extract_strided_slice %1 {offsets = [0, 3], sizes = [128, 1], strides = [1, 1]} : vector<128x18xf32> to vector<128x1xf32>
    %34 = vector.extract_strided_slice %0 {offsets = [3, 0], sizes = [1, 128], strides = [1, 1]} : vector<12x128xf32> to vector<1x128xf32>
    %35 = vector.broadcast %33 : vector<128x1xf32> to vector<128x128xf32>
    %36 = vector.broadcast %34 : vector<1x128xf32> to vector<128x128xf32>
    %37 = arith.mulf %35, %36 : vector<128x128xf32>
    %38 = arith.addf %32, %37 : vector<128x128xf32>
    %39 = vector.extract_strided_slice %1 {offsets = [0, 4], sizes = [128, 1], strides = [1, 1]} : vector<128x18xf32> to vector<128x1xf32>
    %40 = vector.extract_strided_slice %0 {offsets = [4, 0], sizes = [1, 128], strides = [1, 1]} : vector<12x128xf32> to vector<1x128xf32>
    %41 = vector.broadcast %39 : vector<128x1xf32> to vector<128x128xf32>
    %42 = vector.broadcast %40 : vector<1x128xf32> to vector<128x128xf32>
    %43 = arith.mulf %41, %42 : vector<128x128xf32>
    %44 = arith.addf %38, %43 : vector<128x128xf32>
    %45 = vector.extract_strided_slice %1 {offsets = [0, 5], sizes = [128, 1], strides = [1, 1]} : vector<128x18xf32> to vector<128x1xf32>
    %46 = vector.extract_strided_slice %0 {offsets = [5, 0], sizes = [1, 128], strides = [1, 1]} : vector<12x128xf32> to vector<1x128xf32>
    %47 = vector.broadcast %45 : vector<128x1xf32> to vector<128x128xf32>
    %48 = vector.broadcast %46 : vector<1x128xf32> to vector<128x128xf32>
    %49 = arith.mulf %47, %48 : vector<128x128xf32>
    %50 = arith.addf %44, %49 : vector<128x128xf32>
    %51 = vector.extract_strided_slice %1 {offsets = [0, 6], sizes = [128, 1], strides = [1, 1]} : vector<128x18xf32> to vector<128x1xf32>
    %52 = vector.extract_strided_slice %0 {offsets = [6, 0], sizes = [1, 128], strides = [1, 1]} : vector<12x128xf32> to vector<1x128xf32>
    %53 = vector.broadcast %51 : vector<128x1xf32> to vector<128x128xf32>
    %54 = vector.broadcast %52 : vector<1x128xf32> to vector<128x128xf32>
    %55 = arith.mulf %53, %54 : vector<128x128xf32>
    %56 = arith.addf %50, %55 : vector<128x128xf32>
    %57 = vector.extract_strided_slice %1 {offsets = [0, 7], sizes = [128, 1], strides = [1, 1]} : vector<128x18xf32> to vector<128x1xf32>
    %58 = vector.extract_strided_slice %0 {offsets = [7, 0], sizes = [1, 128], strides = [1, 1]} : vector<12x128xf32> to vector<1x128xf32>
    %59 = vector.broadcast %57 : vector<128x1xf32> to vector<128x128xf32>
    %60 = vector.broadcast %58 : vector<1x128xf32> to vector<128x128xf32>
    %61 = arith.mulf %59, %60 : vector<128x128xf32>
    %62 = arith.addf %56, %61 : vector<128x128xf32>
    %63 = vector.extract_strided_slice %1 {offsets = [0, 8], sizes = [128, 1], strides = [1, 1]} : vector<128x18xf32> to vector<128x1xf32>
    %64 = vector.extract_strided_slice %0 {offsets = [8, 0], sizes = [1, 128], strides = [1, 1]} : vector<12x128xf32> to vector<1x128xf32>
    %65 = vector.broadcast %63 : vector<128x1xf32> to vector<128x128xf32>
    %66 = vector.broadcast %64 : vector<1x128xf32> to vector<128x128xf32>
    %67 = arith.mulf %65, %66 : vector<128x128xf32>
    %68 = arith.addf %62, %67 : vector<128x128xf32>
    %69 = vector.extract_strided_slice %1 {offsets = [0, 9], sizes = [128, 1], strides = [1, 1]} : vector<128x18xf32> to vector<128x1xf32>
    %70 = vector.extract_strided_slice %0 {offsets = [9, 0], sizes = [1, 128], strides = [1, 1]} : vector<12x128xf32> to vector<1x128xf32>
    %71 = vector.broadcast %69 : vector<128x1xf32> to vector<128x128xf32>
    %72 = vector.broadcast %70 : vector<1x128xf32> to vector<128x128xf32>
    %73 = arith.mulf %71, %72 : vector<128x128xf32>
    %74 = arith.addf %68, %73 : vector<128x128xf32>
    %75 = vector.extract_strided_slice %1 {offsets = [0, 10], sizes = [128, 1], strides = [1, 1]} : vector<128x18xf32> to vector<128x1xf32>
    %76 = vector.extract_strided_slice %0 {offsets = [10, 0], sizes = [1, 128], strides = [1, 1]} : vector<12x128xf32> to vector<1x128xf32>
    %77 = vector.broadcast %75 : vector<128x1xf32> to vector<128x128xf32>
    %78 = vector.broadcast %76 : vector<1x128xf32> to vector<128x128xf32>
    %79 = arith.mulf %77, %78 : vector<128x128xf32>
    %80 = arith.addf %74, %79 : vector<128x128xf32>
    %81 = vector.extract_strided_slice %1 {offsets = [0, 11], sizes = [128, 1], strides = [1, 1]} : vector<128x18xf32> to vector<128x1xf32>
    %82 = vector.extract_strided_slice %0 {offsets = [11, 0], sizes = [1, 128], strides = [1, 1]} : vector<12x128xf32> to vector<1x128xf32>
    %83 = vector.broadcast %81 : vector<128x1xf32> to vector<128x128xf32>
    %84 = vector.broadcast %82 : vector<1x128xf32> to vector<128x128xf32>
    %85 = arith.mulf %83, %84 : vector<128x128xf32>
    %86 = arith.addf %80, %85 : vector<128x128xf32>
    %cst = arith.constant 0.000000e+00 : f32
    %87 = vector.broadcast %cst : f32 to vector<128x128xf32>
    %88 = arith.maximumf %86, %87 : vector<128x128xf32>
    %89 = arith.truncf %88 : vector<128x128xf32> to vector<128x128xbf16>
    %cst_10 = arith.constant dense<0.000000e+00> : vector<128x128xf32>
    %90 = tpu.matmul %9, %89, %cst_10 {dimension_numbers = #tpu.dot_dimension_numbers<[1], [0], [0], [1], [0, 0, 1, 1], [], []>} : vector<128x128xbf16>, vector<128x128xbf16>, vector<128x128xf32> -> vector<128x128xf32>
    %91 = vector.broadcast %3 : vector<128x1xf32> to vector<128x128xf32>
    %92 = arith.addf %90, %91 : vector<128x128xf32>
    %cst_11 = arith.constant 0.000000e+00 : f32
    %93 = vector.broadcast %cst_11 : f32 to vector<128x128xf32>
    %94 = arith.maximumf %92, %93 : vector<128x128xf32>
    %95 = arith.truncf %94 : vector<128x128xf32> to vector<128x128xbf16>
    %cst_12 = arith.constant dense<0.000000e+00> : vector<128x128xf32>
    %96 = tpu.matmul %11, %95, %cst_12 {dimension_numbers = #tpu.dot_dimension_numbers<[1], [0], [0], [1], [0, 0, 1, 1], [], []>} : vector<128x128xbf16>, vector<128x128xbf16>, vector<128x128xf32> -> vector<128x128xf32>
    %97 = vector.broadcast %4 : vector<128x1xf32> to vector<128x128xf32>
    %98 = arith.addf %96, %97 : vector<128x128xf32>
    %cst_13 = arith.constant 0.000000e+00 : f32
    %99 = vector.broadcast %cst_13 : f32 to vector<128x128xf32>
    %100 = arith.maximumf %98, %99 : vector<128x128xf32>
    %101 = arith.truncf %100 : vector<128x128xf32> to vector<128x128xbf16>
    %cst_14 = arith.constant dense<0.000000e+00> : vector<128x128xf32>
    %102 = tpu.matmul %11, %101, %cst_14 {dimension_numbers = #tpu.dot_dimension_numbers<[1], [0], [0], [1], [0, 0, 1, 1], [], []>} : vector<128x128xbf16>, vector<128x128xbf16>, vector<128x128xf32> -> vector<128x128xf32>
    %103 = vector.broadcast %4 : vector<128x1xf32> to vector<128x128xf32>
    %104 = arith.addf %102, %103 : vector<128x128xf32>
    %cst_15 = arith.constant 0.000000e+00 : f32
    %105 = vector.broadcast %cst_15 : f32 to vector<128x128xf32>
    %106 = arith.maximumf %104, %105 : vector<128x128xf32>
    %107 = arith.truncf %106 : vector<128x128xf32> to vector<128x128xbf16>
    %cst_16 = arith.constant dense<0.000000e+00> : vector<128x128xf32>
    %108 = tpu.matmul %11, %107, %cst_16 {dimension_numbers = #tpu.dot_dimension_numbers<[1], [0], [0], [1], [0, 0, 1, 1], [], []>} : vector<128x128xbf16>, vector<128x128xbf16>, vector<128x128xf32> -> vector<128x128xf32>
    %109 = vector.broadcast %4 : vector<128x1xf32> to vector<128x128xf32>
    %110 = arith.addf %108, %109 : vector<128x128xf32>
    %cst_17 = arith.constant 0.000000e+00 : f32
    %111 = vector.broadcast %cst_17 : f32 to vector<128x128xf32>
    %112 = arith.maximumf %110, %111 : vector<128x128xf32>
    %113 = arith.truncf %112 : vector<128x128xf32> to vector<128x128xbf16>
    %cst_18 = arith.constant dense<0.000000e+00> : vector<128x128xf32>
    %114 = tpu.matmul %13, %113, %cst_18 {dimension_numbers = #tpu.dot_dimension_numbers<[1], [0], [0], [1], [0, 0, 1, 1], [], []>} : vector<128x128xbf16>, vector<128x128xbf16>, vector<128x128xf32> -> vector<128x128xf32>
    %115 = vector.broadcast %5 : vector<128x1xf32> to vector<128x128xf32>
    %116 = arith.addf %114, %115 : vector<128x128xf32>
    %cst_19 = arith.constant 0.000000e+00 : f32
    %117 = vector.broadcast %cst_19 : f32 to vector<128x128xf32>
    %118 = arith.maximumf %116, %117 : vector<128x128xf32>
    %119 = vector.broadcast %6 : vector<128x1xf32> to vector<128x128xf32>
    %120 = arith.mulf %118, %119 : vector<128x128xf32>
    %121 = vector.extract_strided_slice %120 {offsets = [0, 0], sizes = [32, 128], strides = [1, 1]} : vector<128x128xf32> to vector<32x128xf32>
    %cst_20 = arith.constant dense<0.000000e+00> : vector<128xf32>
    %122 = vector.multi_reduction <add>, %121, %cst_20 [0] : vector<32x128xf32> to vector<128xf32>
    %123 = vector.shape_cast %122 : vector<128xf32> to vector<1x128xf32>
    %124 = vector.extract_strided_slice %120 {offsets = [32, 0], sizes = [32, 128], strides = [1, 1]} : vector<128x128xf32> to vector<32x128xf32>
    %cst_21 = arith.constant dense<0.000000e+00> : vector<128xf32>
    %125 = vector.multi_reduction <add>, %124, %cst_21 [0] : vector<32x128xf32> to vector<128xf32>
    %126 = vector.shape_cast %125 : vector<128xf32> to vector<1x128xf32>
    %127 = vector.extract_strided_slice %120 {offsets = [64, 0], sizes = [32, 128], strides = [1, 1]} : vector<128x128xf32> to vector<32x128xf32>
    %cst_22 = arith.constant dense<0.000000e+00> : vector<128xf32>
    %128 = vector.multi_reduction <add>, %127, %cst_22 [0] : vector<32x128xf32> to vector<128xf32>
    %129 = vector.shape_cast %128 : vector<128xf32> to vector<1x128xf32>
    %130 = vector.extract_strided_slice %120 {offsets = [96, 0], sizes = [32, 128], strides = [1, 1]} : vector<128x128xf32> to vector<32x128xf32>
    %cst_23 = arith.constant dense<0.000000e+00> : vector<128xf32>
    %131 = vector.multi_reduction <add>, %130, %cst_23 [0] : vector<32x128xf32> to vector<128xf32>
    %132 = vector.shape_cast %131 : vector<128xf32> to vector<1x128xf32>
    %133 = tpu.concatenate %123, %126, %129, %132 in 0 : vector<1x128xf32>, vector<1x128xf32>, vector<1x128xf32>, vector<1x128xf32> -> vector<4x128xf32>
    %134 = vector.broadcast %7 : vector<1x1xf32> to vector<4x128xf32>
    %135 = arith.addf %133, %134 : vector<4x128xf32>
    %c0_24 = arith.constant 0 : index
    %c0_25 = arith.constant 0 : index
    %136 = vector.load %arg4[%c0_24, %c0_25] : memref<4x128xf32, #tpu.memory_space<vmem>>, vector<4x128xf32>
    tpu.vector_store %arg4[%c0_24, %c0_25], %135 {strides = array<i32>} : memref<4x128xf32, #tpu.memory_space<vmem>>, vector<4x128xf32>,
    return
  }
  func.func @transform_0(%arg0: i32) -> (i32, i32) {
    %c0_i32 = arith.constant 0 : i32
    %c0_i32_0 = arith.constant 0 : i32
    return %c0_i32, %arg0 : i32, i32
  }
  func.func @transform_1(%arg0: i32) -> (i32, i32, i32) {
    %c0_i32 = arith.constant 0 : i32
    %c0_i32_0 = arith.constant 0 : i32
    %c0_i32_1 = arith.constant 0 : i32
    %c0_i32_2 = arith.constant 0 : i32
    return %c0_i32, %c0_i32_0, %c0_i32_1 : i32, i32, i32
  }
  func.func @transform_2(%arg0: i32) -> (i32, i32) {
    %c0_i32 = arith.constant 0 : i32
    %c0_i32_0 = arith.constant 0 : i32
    %c0_i32_1 = arith.constant 0 : i32
    return %c0_i32, %c0_i32_0 : i32, i32
  }
  func.func @transform_3(%arg0: i32) -> (i32, i32) {
    %c0_i32 = arith.constant 0 : i32
    %c0_i32_0 = arith.constant 0 : i32
    return %c0_i32, %arg0 : i32, i32
  }
}

</mosaic_0001>

<llo_original>
// kernel: tpu_custom_call.1
$region0: #{tpu_custom_call.1}
  #allocation0 [shape = 'u32[]', space=smem, size = 0x4, offset = 0x4, fixed_abs, tag = 'smem constant byte address 0x4 - core index']
  #allocation1 [shape = 'u32[144,128]{1,0:T(1,128)}', space=vmem, size = 0x12000, scoped, tag = 'internal scratch']
  %s0 = inlined_call_operand.vmem [shape: f32[12,128], index: 0, kind: input, shape index: {}]
  %s1 = inlined_call_operand.hbm [shape: bf16[3,128,128], index: 1, kind: input, shape index: {}]
  %s2 = inlined_call_operand.vmem [shape: f32[128,18], index: 2, kind: input, shape index: {}]
  %s3 = inlined_call_operand.hbm [shape: f32[4,128], index: 3, kind: output, shape index: {}]
  %s4 = sld [smem:[#allocation0]]
  $region26: #{tpu_custom_call.1} parent=0
    _
  %s6 = ssub.s32 1, %s4
  %s7 = scalar_select 0, %s6, %s4
  $region1: #{tpu_custom_call.1} parent=0
    #allocation2 [shape = 'u8[98304]{0}', space=vmem, size = 0x18000, scoped, tag = 'input window, operand 1, single buffered']
    #allocation3 [shape = 's32[1]{0}', space=sflag, size = 0x4, scoped, tag = 'scoped memory for tpu_custom_call.1']
    #allocation4 [shape = 's32[1]{0}', space=sflag, size = 0x4, scoped, tag = 'scoped memory for tpu_custom_call.1']
    #allocation5 [shape = 'u8[2048]{0}', space=vmem, size = 0x800, scoped, tag = 'output window, operand 0, single buffered']
    %8 = vsyncpa [#allocation3], 0
    %9 = vsyncpa [#allocation4], 0
    // Predicated region
    $region2: #{tpu_custom_call.1} parent=1 // pred_check
      _
    $region3: #{tpu_custom_call.1} parent=1 // pred_check_branch
      %11 = sbr.rel (0) target = $region5
    $region4: #{tpu_custom_call.1} parent=1 // pred_region
      _
    $region5: #{tpu_custom_call.1} parent=1 // pred_fallthru
      _
    // Predicated region
    $region6: #{tpu_custom_call.1} parent=1 // pred_check
      _
    $region7: #{tpu_custom_call.1} parent=1 // pred_check_branch
      %13 = sbr.rel (0) target = $region9
    $region8: #{tpu_custom_call.1} parent=1 // pred_region
      %s15 = ssub.s32 3072, 3072
      %16 = vsyncadd [#allocation3], %s15
      %s17 = sshll.u32 [#allocation2], 4
      %s18 = int_to_ptr.vmem [resolvable:$true] %s17
      %23 = dma.hbm_to_vmem [thread:$0]  %s1, 3072, %s18, [#allocation3], 64, 64, 4
    $region9: #{tpu_custom_call.1} parent=1 // pred_fallthru
      _
    // Predicated region
    $region10: #{tpu_custom_call.1} parent=1 // pred_check
      _
    $region11: #{tpu_custom_call.1} parent=1 // pred_check_branch
      %25 = sbr.rel (0) target = $region13
    $region12: #{tpu_custom_call.1} parent=1 // pred_region
      _
    $region13: #{tpu_custom_call.1} parent=1 // pred_fallthru
      _
    // Predicated region
    $region14: #{tpu_custom_call.1} parent=1 // pred_check
      _
    $region15: #{tpu_custom_call.1} parent=1 // pred_check_branch
      %27 = sbr.rel (0) target = $region17
    $region16: #{tpu_custom_call.1} parent=1 // pred_region
      %28 = dma.done [#allocation3], 3072
    $region17: #{tpu_custom_call.1} parent=1 // pred_fallthru
      _
    %v30 = vld [vmem:[%s0] sm:$0xff]
    %v31 = vld [vmem:[%s0 + $0x8] sm:$0xf]
    %v32 = vld [vmem:[%s2] sm:$0xff]
    %v33 = vld [vmem:[%s2 + $0x8] sm:$0xff]
    %v34 = vld [vmem:[%s2 + $0x10] sm:$0xff]
    %v35 = vld [vmem:[%s2 + $0x18] sm:$0xff]
    %v36 = vld [vmem:[%s2 + $0x20] sm:$0xff]
    %v37 = vld [vmem:[%s2 + $0x28] sm:$0xff]
    %v38 = vld [vmem:[%s2 + $0x30] sm:$0xff]
    %v39 = vld [vmem:[%s2 + $0x38] sm:$0xff]
    %v40 = vld [vmem:[%s2 + $0x40] sm:$0xff]
    %v41 = vld [vmem:[%s2 + $0x48] sm:$0xff]
    %v42 = vld [vmem:[%s2 + $0x50] sm:$0xff]
    %v43 = vld [vmem:[%s2 + $0x58] sm:$0xff]
    %v44 = vld [vmem:[%s2 + $0x60] sm:$0xff]
    %v45 = vld [vmem:[%s2 + $0x68] sm:$0xff]
    %v46 = vld [vmem:[%s2 + $0x70] sm:$0xff]
    %v47 = vld [vmem:[%s2 + $0x78] sm:$0xff]
    %v48 = vld [vmem:[#allocation2] sm:$0xf]
    %v49 = vld [vmem:[#allocation2 + $0x4] sm:$0xf]
    %v50 = vld [vmem:[#allocation2 + $0x8] sm:$0xf]
    %v51 = vld [vmem:[#allocation2 + $0xc] sm:$0xf]
    %v52 = vld [vmem:[#allocation2 + $0x10] sm:$0xf]
    %v53 = vld [vmem:[#allocation2 + $0x14] sm:$0xf]
    %v54 = vld [vmem:[#allocation2 + $0x18] sm:$0xf]
    %v55 = vld [vmem:[#allocation2 + $0x1c] sm:$0xf]
    %v56 = vld [vmem:[#allocation2 + $0x20] sm:$0xf]
    %v57 = vld [vmem:[#allocation2 + $0x24] sm:$0xf]
    %v58 = vld [vmem:[#allocation2 + $0x28] sm:$0xf]
    %v59 = vld [vmem:[#allocation2 + $0x2c] sm:$0xf]
    %v60 = vld [vmem:[#allocation2 + $0x30] sm:$0xf]
    %v61 = vld [vmem:[#allocation2 + $0x34] sm:$0xf]
    %v62 = vld [vmem:[#allocation2 + $0x38] sm:$0xf]
    %v63 = vld [vmem:[#allocation2 + $0x3c] sm:$0xf]
    %s64 = scalar_lea.vmem [#allocation2], 64
    %v65 = vld [vmem:[%s64] sm:$0xf]
    %v66 = vld [vmem:[%s64 + $0x4] sm:$0xf]
    %v67 = vld [vmem:[%s64 + $0x8] sm:$0xf]
    %v68 = vld [vmem:[%s64 + $0xc] sm:$0xf]
    %v69 = vld [vmem:[%s64 + $0x10] sm:$0xf]
    %v70 = vld [vmem:[%s64 + $0x14] sm:$0xf]
    %v71 = vld [vmem:[%s64 + $0x18] sm:$0xf]
    %v72 = vld [vmem:[%s64 + $0x1c] sm:$0xf]
    %v73 = vld [vmem:[%s64 + $0x20] sm:$0xf]
    %v74 = vld [vmem:[%s64 + $0x24] sm:$0xf]
    %v75 = vld [vmem:[%s64 + $0x28] sm:$0xf]
    %v76 = vld [vmem:[%s64 + $0x2c] sm:$0xf]
    %v77 = vld [vmem:[%s64 + $0x30] sm:$0xf]
    %v78 = vld [vmem:[%s64 + $0x34] sm:$0xf]
    %v79 = vld [vmem:[%s64 + $0x38] sm:$0xf]
    %v80 = vld [vmem:[%s64 + $0x3c] sm:$0xf]
    %s81 = scalar_lea.vmem [#allocation2], 128
    %v82 = vld [vmem:[%s81] sm:$0xf]
    %v83 = vld [vmem:[%s81 + $0x4] sm:$0xf]
    %v84 = vld [vmem:[%s81 + $0x8] sm:$0xf]
    %v85 = vld [vmem:[%s81 + $0xc] sm:$0xf]
    %v86 = vld [vmem:[%s81 + $0x10] sm:$0xf]
    %v87 = vld [vmem:[%s81 + $0x14] sm:$0xf]
    %v88 = vld [vmem:[%s81 + $0x18] sm:$0xf]
    %v89 = vld [vmem:[%s81 + $0x1c] sm:$0xf]
    %v90 = vld [vmem:[%s81 + $0x20] sm:$0xf]
    %v91 = vld [vmem:[%s81 + $0x24] sm:$0xf]
    %v92 = vld [vmem:[%s81 + $0x28] sm:$0xf]
    %v93 = vld [vmem:[%s81 + $0x2c] sm:$0xf]
    %v94 = vld [vmem:[%s81 + $0x30] sm:$0xf]
    %v95 = vld [vmem:[%s81 + $0x34] sm:$0xf]
    %v96 = vld [vmem:[%s81 + $0x38] sm:$0xf]
    %v97 = vld [vmem:[%s81 + $0x3c] sm:$0xf]
    %99 = vset.pattern.permute.xlu0 0
    %100 = vperm.xlu0 %99, %v32
    %v101 = vpop.permute.xlu0 %100
    %104 = vset.pattern.permute.xlu0 0
    %105 = vperm.xlu0 %104, %v33
    %v106 = vpop.permute.xlu0 %105
    %109 = vset.pattern.permute.xlu0 0
    %110 = vperm.xlu0 %109, %v34
    %v111 = vpop.permute.xlu0 %110
    %114 = vset.pattern.permute.xlu0 0
    %115 = vperm.xlu0 %114, %v35
    %v116 = vpop.permute.xlu0 %115
    %119 = vset.pattern.permute.xlu0 0
    %120 = vperm.xlu0 %119, %v36
    %v121 = vpop.permute.xlu0 %120
    %124 = vset.pattern.permute.xlu0 0
    %125 = vperm.xlu0 %124, %v37
    %v126 = vpop.permute.xlu0 %125
    %129 = vset.pattern.permute.xlu0 0
    %130 = vperm.xlu0 %129, %v38
    %v131 = vpop.permute.xlu0 %130
    %134 = vset.pattern.permute.xlu0 0
    %135 = vperm.xlu0 %134, %v39
    %v136 = vpop.permute.xlu0 %135
    %139 = vset.pattern.permute.xlu0 0
    %140 = vperm.xlu0 %139, %v40
    %v141 = vpop.permute.xlu0 %140
    %144 = vset.pattern.permute.xlu0 0
    %145 = vperm.xlu0 %144, %v41
    %v146 = vpop.permute.xlu0 %145
    %149 = vset.pattern.permute.xlu0 0
    %150 = vperm.xlu0 %149, %v42
    %v151 = vpop.permute.xlu0 %150
    %154 = vset.pattern.permute.xlu0 0
    %155 = vperm.xlu0 %154, %v43
    %v156 = vpop.permute.xlu0 %155
    %159 = vset.pattern.permute.xlu0 0
    %160 = vperm.xlu0 %159, %v44
    %v161 = vpop.permute.xlu0 %160
    %164 = vset.pattern.permute.xlu0 0
    %165 = vperm.xlu0 %164, %v45
    %v166 = vpop.permute.xlu0 %165
    %169 = vset.pattern.permute.xlu0 0
    %170 = vperm.xlu0 %169, %v46
    %v171 = vpop.permute.xlu0 %170
    %174 = vset.pattern.permute.xlu0 0
    %175 = vperm.xlu0 %174, %v47
    %v176 = vpop.permute.xlu0 %175
    %v178 = vlaneseq
    %v179 = vshrl.u32 %v178, 7
    %v180 = vsub.s32 0, %v179
    %v181 = vrot.slane %v30, %v180
    %v182 = vmul.f32 %v101, %v181
    %v183 = vmul.f32 %v106, %v181
    %v184 = vmul.f32 %v111, %v181
    %v185 = vmul.f32 %v116, %v181
    %v186 = vmul.f32 %v121, %v181
    %v187 = vmul.f32 %v126, %v181
    %v188 = vmul.f32 %v131, %v181
    %v189 = vmul.f32 %v136, %v181
    %v190 = vmul.f32 %v141, %v181
    %v191 = vmul.f32 %v146, %v181
    %v192 = vmul.f32 %v151, %v181
    %v193 = vmul.f32 %v156, %v181
    %v194 = vmul.f32 %v161, %v181
    %v195 = vmul.f32 %v166, %v181
    %v196 = vmul.f32 %v171, %v181
    %v197 = vmul.f32 %v176, %v181
    %198 = vset.pattern.permute.xlu0 12
    %199 = vperm.xlu0 %198, %v32
    %v200 = vpop.permute.xlu0 %199
    %202 = vset.pattern.permute.xlu0 12
    %203 = vperm.xlu0 %202, %v33
    %v204 = vpop.permute.xlu0 %203
    %206 = vset.pattern.permute.xlu0 12
    %207 = vperm.xlu0 %206, %v34
    %v208 = vpop.permute.xlu0 %207
    %210 = vset.pattern.permute.xlu0 12
    %211 = vperm.xlu0 %210, %v35
    %v212 = vpop.permute.xlu0 %211
    %214 = vset.pattern.permute.xlu0 12
    %215 = vperm.xlu0 %214, %v36
    %v216 = vpop.permute.xlu0 %215
    %218 = vset.pattern.permute.xlu0 12
    %219 = vperm.xlu0 %218, %v37
    %v220 = vpop.permute.xlu0 %219
    %222 = vset.pattern.permute.xlu0 12
    %223 = vperm.xlu0 %222, %v38
    %v224 = vpop.permute.xlu0 %223
    %226 = vset.pattern.permute.xlu0 12
    %227 = vperm.xlu0 %226, %v39
    %v228 = vpop.permute.xlu0 %227
    %230 = vset.pattern.permute.xlu0 12
    %231 = vperm.xlu0 %230, %v40
    %v232 = vpop.permute.xlu0 %231
    %234 = vset.pattern.permute.xlu0 12
    %235 = vperm.xlu0 %234, %v41
    %v236 = vpop.permute.xlu0 %235
    %238 = vset.pattern.permute.xlu0 12
    %239 = vperm.xlu0 %238, %v42
    %v240 = vpop.permute.xlu0 %239
    %242 = vset.pattern.permute.xlu0 12
    %243 = vperm.xlu0 %242, %v43
    %v244 = vpop.permute.xlu0 %243
    %246 = vset.pattern.permute.xlu0 12
    %247 = vperm.xlu0 %246, %v44
    %v248 = vpop.permute.xlu0 %247
    %250 = vset.pattern.permute.xlu0 12
    %251 = vperm.xlu0 %250, %v45
    %v252 = vpop.permute.xlu0 %251
    %254 = vset.pattern.permute.xlu0 12
    %255 = vperm.xlu0 %254, %v46
    %v256 = vpop.permute.xlu0 %255
    %258 = vset.pattern.permute.xlu0 12
    %259 = vperm.xlu0 %258, %v47
    %v260 = vpop.permute.xlu0 %259
    %v262 = vadd.f32 %v200, %v182
    %v263 = vadd.f32 %v204, %v183
    %v264 = vadd.f32 %v208, %v184
    %v265 = vadd.f32 %v212, %v185
    %v266 = vadd.f32 %v216, %v186
    %v267 = vadd.f32 %v220, %v187
    %v268 = vadd.f32 %v224, %v188
    %v269 = vadd.f32 %v228, %v189
    %v270 = vadd.f32 %v232, %v190
    %v271 = vadd.f32 %v236, %v191
    %v272 = vadd.f32 %v240, %v192
    %v273 = vadd.f32 %v244, %v193
    %v274 = vadd.f32 %v248, %v194
    %v275 = vadd.f32 %v252, %v195
    %v276 = vadd.f32 %v256, %v196
    %v277 = vadd.f32 %v260, %v197
    %278 = vset.pattern.permute.xlu0 1
    %279 = vperm.xlu0 %278, %v32
    %v280 = vpop.permute.xlu0 %279
    %282 = vset.pattern.permute.xlu0 1
    %283 = vperm.xlu0 %282, %v33
    %v284 = vpop.permute.xlu0 %283
    %286 = vset.pattern.permute.xlu0 1
    %287 = vperm.xlu0 %286, %v34
    %v288 = vpop.permute.xlu0 %287
    %290 = vset.pattern.permute.xlu0 1
    %291 = vperm.xlu0 %290, %v35
    %v292 = vpop.permute.xlu0 %291
    %294 = vset.pattern.permute.xlu0 1
    %295 = vperm.xlu0 %294, %v36
    %v296 = vpop.permute.xlu0 %295
    %298 = vset.pattern.permute.xlu0 1
    %299 = vperm.xlu0 %298, %v37
    %v300 = vpop.permute.xlu0 %299
    %302 = vset.pattern.permute.xlu0 1
    %303 = vperm.xlu0 %302, %v38
    %v304 = vpop.permute.xlu0 %303
    %306 = vset.pattern.permute.xlu0 1
    %307 = vperm.xlu0 %306, %v39
    %v308 = vpop.permute.xlu0 %307
    %310 = vset.pattern.permute.xlu0 1
    %311 = vperm.xlu0 %310, %v40
    %v312 = vpop.permute.xlu0 %311
    %314 = vset.pattern.permute.xlu0 1
    %315 = vperm.xlu0 %314, %v41
    %v316 = vpop.permute.xlu0 %315
    %318 = vset.pattern.permute.xlu0 1
    %319 = vperm.xlu0 %318, %v42
    %v320 = vpop.permute.xlu0 %319
    %322 = vset.pattern.permute.xlu0 1
    %323 = vperm.xlu0 %322, %v43
    %v324 = vpop.permute.xlu0 %323
    %326 = vset.pattern.permute.xlu0 1
    %327 = vperm.xlu0 %326, %v44
    %v328 = vpop.permute.xlu0 %327
    %330 = vset.pattern.permute.xlu0 1
    %331 = vperm.xlu0 %330, %v45
    %v332 = vpop.permute.xlu0 %331
    %334 = vset.pattern.permute.xlu0 1
    %335 = vperm.xlu0 %334, %v46
    %v336 = vpop.permute.xlu0 %335
    %338 = vset.pattern.permute.xlu0 1
    %339 = vperm.xlu0 %338, %v47
    %v340 = vpop.permute.xlu0 %339
    %v342 = vlaneseq
    %v343 = vshrl.u32 %v342, 7
    %v344 = vsub.s32 1, %v343
    %v345 = vrot.slane %v30, %v344
    %v346 = vmul.f32 %v280, %v345
    %v347 = vmul.f32 %v284, %v345
    %v348 = vmul.f32 %v288, %v345
    %v349 = vmul.f32 %v292, %v345
    %v350 = vmul.f32 %v296, %v345
    %v351 = vmul.f32 %v300, %v345
    %v352 = vmul.f32 %v304, %v345
    %v353 = vmul.f32 %v308, %v345
    %v354 = vmul.f32 %v312, %v345
    %v355 = vmul.f32 %v316, %v345
    %v356 = vmul.f32 %v320, %v345
    %v357 = vmul.f32 %v324, %v345
    %v358 = vmul.f32 %v328, %v345
    %v359 = vmul.f32 %v332, %v345
    %v360 = vmul.f32 %v336, %v345
    %v361 = vmul.f32 %v340, %v345
    %v362 = vadd.f32 %v262, %v346
    %v363 = vadd.f32 %v263, %v347
    %v364 = vadd.f32 %v264, %v348
    %v365 = vadd.f32 %v265, %v349
    %v366 = vadd.f32 %v266, %v350
    %v367 = vadd.f32 %v267, %v351
    %v368 = vadd.f32 %v268, %v352
    %v369 = vadd.f32 %v269, %v353
    %v370 = vadd.f32 %v270, %v354
    %v371 = vadd.f32 %v271, %v355
    %v372 = vadd.f32 %v272, %v356
    %v373 = vadd.f32 %v273, %v357
    %v374 = vadd.f32 %v274, %v358
    %v375 = vadd.f32 %v275, %v359
    %v376 = vadd.f32 %v276, %v360
    %v377 = vadd.f32 %v277, %v361
    %378 = vset.pattern.permute.xlu0 2
    %379 = vperm.xlu0 %378, %v32
    %v380 = vpop.permute.xlu0 %379
    %382 = vset.pattern.permute.xlu0 2
    %383 = vperm.xlu0 %382, %v33
    %v384 = vpop.permute.xlu0 %383
    %386 = vset.pattern.permute.xlu0 2
    %387 = vperm.xlu0 %386, %v34
    %v388 = vpop.permute.xlu0 %387
    %390 = vset.pattern.permute.xlu0 2
    %391 = vperm.xlu0 %390, %v35
    %v392 = vpop.permute.xlu0 %391
    %394 = vset.pattern.permute.xlu0 2
    %395 = vperm.xlu0 %394, %v36
    %v396 = vpop.permute.xlu0 %395
    %398 = vset.pattern.permute.xlu0 2
    %399 = vperm.xlu0 %398, %v37
    %v400 = vpop.permute.xlu0 %399
    %402 = vset.pattern.permute.xlu0 2
    %403 = vperm.xlu0 %402, %v38
    %v404 = vpop.permute.xlu0 %403
    %406 = vset.pattern.permute.xlu0 2
    %407 = vperm.xlu0 %406, %v39
    %v408 = vpop.permute.xlu0 %407
    %410 = vset.pattern.permute.xlu0 2
    %411 = vperm.xlu0 %410, %v40
    %v412 = vpop.permute.xlu0 %411
    %414 = vset.pattern.permute.xlu0 2
    %415 = vperm.xlu0 %414, %v41
    %v416 = vpop.permute.xlu0 %415
    %418 = vset.pattern.permute.xlu0 2
    %419 = vperm.xlu0 %418, %v42
    %v420 = vpop.permute.xlu0 %419
    %422 = vset.pattern.permute.xlu0 2
    %423 = vperm.xlu0 %422, %v43
    %v424 = vpop.permute.xlu0 %423
    %426 = vset.pattern.permute.xlu0 2
    %427 = vperm.xlu0 %426, %v44
    %v428 = vpop.permute.xlu0 %427
    %430 = vset.pattern.permute.xlu0 2
    %431 = vperm.xlu0 %430, %v45
    %v432 = vpop.permute.xlu0 %431
    %434 = vset.pattern.permute.xlu0 2
    %435 = vperm.xlu0 %434, %v46
    %v436 = vpop.permute.xlu0 %435
    %438 = vset.pattern.permute.xlu0 2
    %439 = vperm.xlu0 %438, %v47
    %v440 = vpop.permute.xlu0 %439
    %v442 = vlaneseq
    %v443 = vshrl.u32 %v442, 7
    %v444 = vsub.s32 2, %v443
    %v445 = vrot.slane %v30, %v444
    %v446 = vmul.f32 %v380, %v445
    %v447 = vmul.f32 %v384, %v445
    %v448 = vmul.f32 %v388, %v445
    %v449 = vmul.f32 %v392, %v445
    %v450 = vmul.f32 %v396, %v445
    %v451 = vmul.f32 %v400, %v445
    %v452 = vmul.f32 %v404, %v445
    %v453 = vmul.f32 %v408, %v445
    %v454 = vmul.f32 %v412, %v445
    %v455 = vmul.f32 %v416, %v445
    %v456 = vmul.f32 %v420, %v445
    %v457 = vmul.f32 %v424, %v445
    %v458 = vmul.f32 %v428, %v445
    %v459 = vmul.f32 %v432, %v445
    %v460 = vmul.f32 %v436, %v445
    %v461 = vmul.f32 %v440, %v445
    %v462 = vadd.f32 %v362, %v446
    %v463 = vadd.f32 %v363, %v447
    %v464 = vadd.f32 %v364, %v448
    %v465 = vadd.f32 %v365, %v449
    %v466 = vadd.f32 %v366, %v450
    %v467 = vadd.f32 %v367, %v451
    %v468 = vadd.f32 %v368, %v452
    %v469 = vadd.f32 %v369, %v453
    %v470 = vadd.f32 %v370, %v454
    %v471 = vadd.f32 %v371, %v455
    %v472 = vadd.f32 %v372, %v456
    %v473 = vadd.f32 %v373, %v457
    %v474 = vadd.f32 %v374, %v458
    %v475 = vadd.f32 %v375, %v459
    %v476 = vadd.f32 %v376, %v460
    %v477 = vadd.f32 %v377, %v461
    %478 = vset.pattern.permute.xlu0 3
    %479 = vperm.xlu0 %478, %v32
    %v480 = vpop.permute.xlu0 %479
    %482 = vset.pattern.permute.xlu0 3
    %483 = vperm.xlu0 %482, %v33
    %v484 = vpop.permute.xlu0 %483
    %486 = vset.pattern.permute.xlu0 3
    %487 = vperm.xlu0 %486, %v34
    %v488 = vpop.permute.xlu0 %487
    %490 = vset.pattern.permute.xlu0 3
    %491 = vperm.xlu0 %490, %v35
    %v492 = vpop.permute.xlu0 %491
    %494 = vset.pattern.permute.xlu0 3
    %495 = vperm.xlu0 %494, %v36
    %v496 = vpop.permute.xlu0 %495
    %498 = vset.pattern.permute.xlu0 3
    %499 = vperm.xlu0 %498, %v37
    %v500 = vpop.permute.xlu0 %499
    %502 = vset.pattern.permute.xlu0 3
    %503 = vperm.xlu0 %502, %v38
    %v504 = vpop.permute.xlu0 %503
    %506 = vset.pattern.permute.xlu0 3
    %507 = vperm.xlu0 %506, %v39
    %v508 = vpop.permute.xlu0 %507
    %510 = vset.pattern.permute.xlu0 3
    %511 = vperm.xlu0 %510, %v40
    %v512 = vpop.permute.xlu0 %511
    %514 = vset.pattern.permute.xlu0 3
    %515 = vperm.xlu0 %514, %v41
    %v516 = vpop.permute.xlu0 %515
    %518 = vset.pattern.permute.xlu0 3
    %519 = vperm.xlu0 %518, %v42
    %v520 = vpop.permute.xlu0 %519
    %522 = vset.pattern.permute.xlu0 3
    %523 = vperm.xlu0 %522, %v43
    %v524 = vpop.permute.xlu0 %523
    %526 = vset.pattern.permute.xlu0 3
    %527 = vperm.xlu0 %526, %v44
    %v528 = vpop.permute.xlu0 %527
    %530 = vset.pattern.permute.xlu0 3
    %531 = vperm.xlu0 %530, %v45
    %v532 = vpop.permute.xlu0 %531
    %534 = vset.pattern.permute.xlu0 3
    %535 = vperm.xlu0 %534, %v46
    %v536 = vpop.permute.xlu0 %535
    %538 = vset.pattern.permute.xlu0 3
    %539 = vperm.xlu0 %538, %v47
    %v540 = vpop.permute.xlu0 %539
    %v542 = vlaneseq
    %v543 = vshrl.u32 %v542, 7
    %v544 = vsub.s32 3, %v543
    %v545 = vrot.slane %v30, %v544
    %v546 = vmul.f32 %v480, %v545
    %v547 = vmul.f32 %v484, %v545
    %v548 = vmul.f32 %v488, %v545
    %v549 = vmul.f32 %v492, %v545
    %v550 = vmul.f32 %v496, %v545
    %v551 = vmul.f32 %v500, %v545
    %v552 = vmul.f32 %v504, %v545
    %v553 = vmul.f32 %v508, %v545
    %v554 = vmul.f32 %v512, %v545
    %v555 = vmul.f32 %v516, %v545
    %v556 = vmul.f32 %v520, %v545
    %v557 = vmul.f32 %v524, %v545
    %v558 = vmul.f32 %v528, %v545
    %v559 = vmul.f32 %v532, %v545
    %v560 = vmul.f32 %v536, %v545
    %v561 = vmul.f32 %v540, %v545
    %v562 = vadd.f32 %v462, %v546
    %v563 = vadd.f32 %v463, %v547
    %v564 = vadd.f32 %v464, %v548
    %v565 = vadd.f32 %v465, %v549
    %v566 = vadd.f32 %v466, %v550
    %v567 = vadd.f32 %v467, %v551
    %v568 = vadd.f32 %v468, %v552
    %v569 = vadd.f32 %v469, %v553
    %v570 = vadd.f32 %v470, %v554
    %v571 = vadd.f32 %v471, %v555
    %v572 = vadd.f32 %v472, %v556
    %v573 = vadd.f32 %v473, %v557
    %v574 = vadd.f32 %v474, %v558
    %v575 = vadd.f32 %v475, %v559
    %v576 = vadd.f32 %v476, %v560
    %v577 = vadd.f32 %v477, %v561
    %578 = vset.pattern.permute.xlu0 4
    %579 = vperm.xlu0 %578, %v32
    %v580 = vpop.permute.xlu0 %579
    %582 = vset.pattern.permute.xlu0 4
    %583 = vperm.xlu0 %582, %v33
    %v584 = vpop.permute.xlu0 %583
    %586 = vset.pattern.permute.xlu0 4
    %587 = vperm.xlu0 %586, %v34
    %v588 = vpop.permute.xlu0 %587
    %590 = vset.pattern.permute.xlu0 4
    %591 = vperm.xlu0 %590, %v35
    %v592 = vpop.permute.xlu0 %591
    %594 = vset.pattern.permute.xlu0 4
    %595 = vperm.xlu0 %594, %v36
    %v596 = vpop.permute.xlu0 %595
    %598 = vset.pattern.permute.xlu0 4
    %599 = vperm.xlu0 %598, %v37
    %v600 = vpop.permute.xlu0 %599
    %602 = vset.pattern.permute.xlu0 4
    %603 = vperm.xlu0 %602, %v38
    %v604 = vpop.permute.xlu0 %603
    %606 = vset.pattern.permute.xlu0 4
    %607 = vperm.xlu0 %606, %v39
    %v608 = vpop.permute.xlu0 %607
    %610 = vset.pattern.permute.xlu0 4
    %611 = vperm.xlu0 %610, %v40
    %v612 = vpop.permute.xlu0 %611
    %614 = vset.pattern.permute.xlu0 4
    %615 = vperm.xlu0 %614, %v41
    %v616 = vpop.permute.xlu0 %615
    %618 = vset.pattern.permute.xlu0 4
    %619 = vperm.xlu0 %618, %v42
    %v620 = vpop.permute.xlu0 %619
    %622 = vset.pattern.permute.xlu0 4
    %623 = vperm.xlu0 %622, %v43
    %v624 = vpop.permute.xlu0 %623
    %626 = vset.pattern.permute.xlu0 4
    %627 = vperm.xlu0 %626, %v44
    %v628 = vpop.permute.xlu0 %627
    %630 = vset.pattern.permute.xlu0 4
    %631 = vperm.xlu0 %630, %v45
    %v632 = vpop.permute.xlu0 %631
    %634 = vset.pattern.permute.xlu0 4
    %635 = vperm.xlu0 %634, %v46
    %v636 = vpop.permute.xlu0 %635
    %638 = vset.pattern.permute.xlu0 4
    %639 = vperm.xlu0 %638, %v47
    %v640 = vpop.permute.xlu0 %639
    %v642 = vlaneseq
    %v643 = vshrl.u32 %v642, 7
    %v644 = vsub.s32 4, %v643
    %v645 = vrot.slane %v30, %v644
    %v646 = vmul.f32 %v580, %v645
    %v647 = vmul.f32 %v584, %v645
    %v648 = vmul.f32 %v588, %v645
    %v649 = vmul.f32 %v592, %v645
    %v650 = vmul.f32 %v596, %v645
    %v651 = vmul.f32 %v600, %v645
    %v652 = vmul.f32 %v604, %v645
    %v653 = vmul.f32 %v608, %v645
    %v654 = vmul.f32 %v612, %v645
    %v655 = vmul.f32 %v616, %v645
    %v656 = vmul.f32 %v620, %v645
    %v657 = vmul.f32 %v624, %v645
    %v658 = vmul.f32 %v628, %v645
    %v659 = vmul.f32 %v632, %v645
    %v660 = vmul.f32 %v636, %v645
    %v661 = vmul.f32 %v640, %v645
    %v662 = vadd.f32 %v562, %v646
    %v663 = vadd.f32 %v563, %v647
    %v664 = vadd.f32 %v564, %v648
    %v665 = vadd.f32 %v565, %v649
    %v666 = vadd.f32 %v566, %v650
    %v667 = vadd.f32 %v567, %v651
    %v668 = vadd.f32 %v568, %v652
    %v669 = vadd.f32 %v569, %v653
    %v670 = vadd.f32 %v570, %v654
    %v671 = vadd.f32 %v571, %v655
    %v672 = vadd.f32 %v572, %v656
    %v673 = vadd.f32 %v573, %v657
    %v674 = vadd.f32 %v574, %v658
    %v675 = vadd.f32 %v575, %v659
    %v676 = vadd.f32 %v576, %v660
    %v677 = vadd.f32 %v577, %v661
    %678 = vset.pattern.permute.xlu0 5
    %679 = vperm.xlu0 %678, %v32
    %v680 = vpop.permute.xlu0 %679
    %682 = vset.pattern.permute.xlu0 5
    %683 = vperm.xlu0 %682, %v33
    %v684 = vpop.permute.xlu0 %683
    %686 = vset.pattern.permute.xlu0 5
    %687 = vperm.xlu0 %686, %v34
    %v688 = vpop.permute.xlu0 %687
    %690 = vset.pattern.permute.xlu0 5
    %691 = vperm.xlu0 %690, %v35
    %v692 = vpop.permute.xlu0 %691
    %694 = vset.pattern.permute.xlu0 5
    %695 = vperm.xlu0 %694, %v36
    %v696 = vpop.permute.xlu0 %695
    %698 = vset.pattern.permute.xlu0 5
    %699 = vperm.xlu0 %698, %v37
    %v700 = vpop.permute.xlu0 %699
    %702 = vset.pattern.permute.xlu0 5
    %703 = vperm.xlu0 %702, %v38
    %v704 = vpop.permute.xlu0 %703
    %706 = vset.pattern.permute.xlu0 5
    %707 = vperm.xlu0 %706, %v39
    %v708 = vpop.permute.xlu0 %707
    %710 = vset.pattern.permute.xlu0 5
    %711 = vperm.xlu0 %710, %v40
    %v712 = vpop.permute.xlu0 %711
    %714 = vset.pattern.permute.xlu0 5
    %715 = vperm.xlu0 %714, %v41
    %v716 = vpop.permute.xlu0 %715
    %718 = vset.pattern.permute.xlu0 5
    %719 = vperm.xlu0 %718, %v42
    %v720 = vpop.permute.xlu0 %719
    %722 = vset.pattern.permute.xlu0 5
    %723 = vperm.xlu0 %722, %v43
    %v724 = vpop.permute.xlu0 %723
    %726 = vset.pattern.permute.xlu0 5
    %727 = vperm.xlu0 %726, %v44
    %v728 = vpop.permute.xlu0 %727
    %730 = vset.pattern.permute.xlu0 5
    %731 = vperm.xlu0 %730, %v45
    %v732 = vpop.permute.xlu0 %731
    %734 = vset.pattern.permute.xlu0 5
    %735 = vperm.xlu0 %734, %v46
    %v736 = vpop.permute.xlu0 %735
    %738 = vset.pattern.permute.xlu0 5
    %739 = vperm.xlu0 %738, %v47
    %v740 = vpop.permute.xlu0 %739
    %v742 = vlaneseq
    %v743 = vshrl.u32 %v742, 7
    %v744 = vsub.s32 5, %v743
    %v745 = vrot.slane %v30, %v744
    %v746 = vmul.f32 %v680, %v745
    %v747 = vmul.f32 %v684, %v745
    %v748 = vmul.f32 %v688, %v745
    %v749 = vmul.f32 %v692, %v745
    %v750 = vmul.f32 %v696, %v745
    %v751 = vmul.f32 %v700, %v745
    %v752 = vmul.f32 %v704, %v745
    %v753 = vmul.f32 %v708, %v745
    %v754 = vmul.f32 %v712, %v745
    %v755 = vmul.f32 %v716, %v745
    %v756 = vmul.f32 %v720, %v745
    %v757 = vmul.f32 %v724, %v745
    %v758 = vmul.f32 %v728, %v745
    %v759 = vmul.f32 %v732, %v745
    %v760 = vmul.f32 %v736, %v745
    %v761 = vmul.f32 %v740, %v745
    %v762 = vadd.f32 %v662, %v746
    %v763 = vadd.f32 %v663, %v747
    %v764 = vadd.f32 %v664, %v748
    %v765 = vadd.f32 %v665, %v749
    %v766 = vadd.f32 %v666, %v750
    %v767 = vadd.f32 %v667, %v751
    %v768 = vadd.f32 %v668, %v752
    %v769 = vadd.f32 %v669, %v753
    %v770 = vadd.f32 %v670, %v754
    %v771 = vadd.f32 %v671, %v755
    %v772 = vadd.f32 %v672, %v756
    %v773 = vadd.f32 %v673, %v757
    %v774 = vadd.f32 %v674, %v758
    %v775 = vadd.f32 %v675, %v759
    %v776 = vadd.f32 %v676, %v760
    %v777 = vadd.f32 %v677, %v761
    %778 = vset.pattern.permute.xlu0 6
    %779 = vperm.xlu0 %778, %v32
    %v780 = vpop.permute.xlu0 %779
    %782 = vset.pattern.permute.xlu0 6
    %783 = vperm.xlu0 %782, %v33
    %v784 = vpop.permute.xlu0 %783
    %786 = vset.pattern.permute.xlu0 6
    %787 = vperm.xlu0 %786, %v34
    %v788 = vpop.permute.xlu0 %787
    %790 = vset.pattern.permute.xlu0 6
    %791 = vperm.xlu0 %790, %v35
    %v792 = vpop.permute.xlu0 %791
    %794 = vset.pattern.permute.xlu0 6
    %795 = vperm.xlu0 %794, %v36
    %v796 = vpop.permute.xlu0 %795
    %798 = vset.pattern.permute.xlu0 6
    %799 = vperm.xlu0 %798, %v37
    %v800 = vpop.permute.xlu0 %799
    %802 = vset.pattern.permute.xlu0 6
    %803 = vperm.xlu0 %802, %v38
    %v804 = vpop.permute.xlu0 %803
    %806 = vset.pattern.permute.xlu0 6
    %807 = vperm.xlu0 %806, %v39
    %v808 = vpop.permute.xlu0 %807
    %810 = vset.pattern.permute.xlu0 6
    %811 = vperm.xlu0 %810, %v40
    %v812 = vpop.permute.xlu0 %811
    %814 = vset.pattern.permute.xlu0 6
    %815 = vperm.xlu0 %814, %v41
    %v816 = vpop.permute.xlu0 %815
    %818 = vset.pattern.permute.xlu0 6
    %819 = vperm.xlu0 %818, %v42
    %v820 = vpop.permute.xlu0 %819
    %822 = vset.pattern.permute.xlu0 6
    %823 = vperm.xlu0 %822, %v43
    %v824 = vpop.permute.xlu0 %823
    %826 = vset.pattern.permute.xlu0 6
    %827 = vperm.xlu0 %826, %v44
    %v828 = vpop.permute.xlu0 %827
    %830 = vset.pattern.permute.xlu0 6
    %831 = vperm.xlu0 %830, %v45
    %v832 = vpop.permute.xlu0 %831
    %834 = vset.pattern.permute.xlu0 6
    %835 = vperm.xlu0 %834, %v46
    %v836 = vpop.permute.xlu0 %835
    %838 = vset.pattern.permute.xlu0 6
    %839 = vperm.xlu0 %838, %v47
    %v840 = vpop.permute.xlu0 %839
    %v842 = vlaneseq
    %v843 = vshrl.u32 %v842, 7
    %v844 = vsub.s32 6, %v843
    %v845 = vrot.slane %v30, %v844
    %v846 = vmul.f32 %v780, %v845
    %v847 = vmul.f32 %v784, %v845
    %v848 = vmul.f32 %v788, %v845
    %v849 = vmul.f32 %v792, %v845
    %v850 = vmul.f32 %v796, %v845
    %v851 = vmul.f32 %v800, %v845
    %v852 = vmul.f32 %v804, %v845
    %v853 = vmul.f32 %v808, %v845
    %v854 = vmul.f32 %v812, %v845
    %v855 = vmul.f32 %v816, %v845
    %v856 = vmul.f32 %v820, %v845
    %v857 = vmul.f32 %v824, %v845
    %v858 = vmul.f32 %v828, %v845
    %v859 = vmul.f32 %v832, %v845
    %v860 = vmul.f32 %v836, %v845
    %v861 = vmul.f32 %v840, %v845
    %v862 = vadd.f32 %v762, %v846
    %v863 = vadd.f32 %v763, %v847
    %v864 = vadd.f32 %v764, %v848
    %v865 = vadd.f32 %v765, %v849
    %v866 = vadd.f32 %v766, %v850
    %v867 = vadd.f32 %v767, %v851
    %v868 = vadd.f32 %v768, %v852
    %v869 = vadd.f32 %v769, %v853
    %v870 = vadd.f32 %v770, %v854
    %v871 = vadd.f32 %v771, %v855
    %v872 = vadd.f32 %v772, %v856
    %v873 = vadd.f32 %v773, %v857
    %v874 = vadd.f32 %v774, %v858
    %v875 = vadd.f32 %v775, %v859
    %v876 = vadd.f32 %v776, %v860
    %v877 = vadd.f32 %v777, %v861
    %878 = vset.pattern.permute.xlu0 7
    %879 = vperm.xlu0 %878, %v32
    %v880 = vpop.permute.xlu0 %879
    %882 = vset.pattern.permute.xlu0 7
    %883 = vperm.xlu0 %882, %v33
    %v884 = vpop.permute.xlu0 %883
    %886 = vset.pattern.permute.xlu0 7
    %887 = vperm.xlu0 %886, %v34
    %v888 = vpop.permute.xlu0 %887
    %890 = vset.pattern.permute.xlu0 7
    %891 = vperm.xlu0 %890, %v35
    %v892 = vpop.permute.xlu0 %891
    %894 = vset.pattern.permute.xlu0 7
    %895 = vperm.xlu0 %894, %v36
    %v896 = vpop.permute.xlu0 %895
    %898 = vset.pattern.permute.xlu0 7
    %899 = vperm.xlu0 %898, %v37
    %v900 = vpop.permute.xlu0 %899
    %902 = vset.pattern.permute.xlu0 7
    %903 = vperm.xlu0 %902, %v38
    %v904 = vpop.permute.xlu0 %903
    %906 = vset.pattern.permute.xlu0 7
    %907 = vperm.xlu0 %906, %v39
    %v908 = vpop.permute.xlu0 %907
    %910 = vset.pattern.permute.xlu0 7
    %911 = vperm.xlu0 %910, %v40
    %v912 = vpop.permute.xlu0 %911
    %914 = vset.pattern.permute.xlu0 7
    %915 = vperm.xlu0 %914, %v41
    %v916 = vpop.permute.xlu0 %915
    %918 = vset.pattern.permute.xlu0 7
    %919 = vperm.xlu0 %918, %v42
    %v920 = vpop.permute.xlu0 %919
    %922 = vset.pattern.permute.xlu0 7
    %923 = vperm.xlu0 %922, %v43
    %v924 = vpop.permute.xlu0 %923
    %926 = vset.pattern.permute.xlu0 7
    %927 = vperm.xlu0 %926, %v44
    %v928 = vpop.permute.xlu0 %927
    %930 = vset.pattern.permute.xlu0 7
    %931 = vperm.xlu0 %930, %v45
    %v932 = vpop.permute.xlu0 %931
    %934 = vset.pattern.permute.xlu0 7
    %935 = vperm.xlu0 %934, %v46
    %v936 = vpop.permute.xlu0 %935
    %938 = vset.pattern.permute.xlu0 7
    %939 = vperm.xlu0 %938, %v47
    %v940 = vpop.permute.xlu0 %939
    %v942 = vlaneseq
    %v943 = vshrl.u32 %v942, 7
    %v944 = vsub.s32 7, %v943
    %v945 = vrot.slane %v30, %v944
    %v946 = vmul.f32 %v880, %v945
    %v947 = vmul.f32 %v884, %v945
    %v948 = vmul.f32 %v888, %v945
    %v949 = vmul.f32 %v892, %v945
    %v950 = vmul.f32 %v896, %v945
    %v951 = vmul.f32 %v900, %v945
    %v952 = vmul.f32 %v904, %v945
    %v953 = vmul.f32 %v908, %v945
    %v954 = vmul.f32 %v912, %v945
    %v955 = vmul.f32 %v916, %v945
    %v956 = vmul.f32 %v920, %v945
    %v957 = vmul.f32 %v924, %v945
    %v958 = vmul.f32 %v928, %v945
    %v959 = vmul.f32 %v932, %v945
    %v960 = vmul.f32 %v936, %v945
    %v961 = vmul.f32 %v940, %v945
    %v962 = vadd.f32 %v862, %v946
    %v963 = vadd.f32 %v863, %v947
    %v964 = vadd.f32 %v864, %v948
    %v965 = vadd.f32 %v865, %v949
    %v966 = vadd.f32 %v866, %v950
    %v967 = vadd.f32 %v867, %v951
    %v968 = vadd.f32 %v868, %v952
    %v969 = vadd.f32 %v869, %v953
    %v970 = vadd.f32 %v870, %v954
    %v971 = vadd.f32 %v871, %v955
    %v972 = vadd.f32 %v872, %v956
    %v973 = vadd.f32 %v873, %v957
    %v974 = vadd.f32 %v874, %v958
    %v975 = vadd.f32 %v875, %v959
    %v976 = vadd.f32 %v876, %v960
    %v977 = vadd.f32 %v877, %v961
    %978 = vset.pattern.permute.xlu0 8
    %979 = vperm.xlu0 %978, %v32
    %v980 = vpop.permute.xlu0 %979
    %982 = vset.pattern.permute.xlu0 8
    %983 = vperm.xlu0 %982, %v33
    %v984 = vpop.permute.xlu0 %983
    %986 = vset.pattern.permute.xlu0 8
    %987 = vperm.xlu0 %986, %v34
    %v988 = vpop.permute.xlu0 %987
    %990 = vset.pattern.permute.xlu0 8
    %991 = vperm.xlu0 %990, %v35
    %v992 = vpop.permute.xlu0 %991
    %994 = vset.pattern.permute.xlu0 8
    %995 = vperm.xlu0 %994, %v36
    %v996 = vpop.permute.xlu0 %995
    %998 = vset.pattern.permute.xlu0 8
    %999 = vperm.xlu0 %998, %v37
    %v1000 = vpop.permute.xlu0 %999
    %1002 = vset.pattern.permute.xlu0 8
    %1003 = vperm.xlu0 %1002, %v38
    %v1004 = vpop.permute.xlu0 %1003
    %1006 = vset.pattern.permute.xlu0 8
    %1007 = vperm.xlu0 %1006, %v39
    %v1008 = vpop.permute.xlu0 %1007
    %1010 = vset.pattern.permute.xlu0 8
    %1011 = vperm.xlu0 %1010, %v40
    %v1012 = vpop.permute.xlu0 %1011
    %1014 = vset.pattern.permute.xlu0 8
    %1015 = vperm.xlu0 %1014, %v41
    %v1016 = vpop.permute.xlu0 %1015
    %1018 = vset.pattern.permute.xlu0 8
    %1019 = vperm.xlu0 %1018, %v42
    %v1020 = vpop.permute.xlu0 %1019
    %1022 = vset.pattern.permute.xlu0 8
    %1023 = vperm.xlu0 %1022, %v43
    %v1024 = vpop.permute.xlu0 %1023
    %1026 = vset.pattern.permute.xlu0 8
    %1027 = vperm.xlu0 %1026, %v44
    %v1028 = vpop.permute.xlu0 %1027
    %1030 = vset.pattern.permute.xlu0 8
    %1031 = vperm.xlu0 %1030, %v45
    %v1032 = vpop.permute.xlu0 %1031
    %1034 = vset.pattern.permute.xlu0 8
    %1035 = vperm.xlu0 %1034, %v46
    %v1036 = vpop.permute.xlu0 %1035
    %1038 = vset.pattern.permute.xlu0 8
    %1039 = vperm.xlu0 %1038, %v47
    %v1040 = vpop.permute.xlu0 %1039
    %v1042 = vlaneseq
    %v1043 = vshrl.u32 %v1042, 7
    %v1044 = vsub.s32 0, %v1043
    %v1045 = vrot.slane %v31, %v1044
    %v1046 = vmul.f32 %v980, %v1045
    %v1047 = vmul.f32 %v984, %v1045
    %v1048 = vmul.f32 %v988, %v1045
    %v1049 = vmul.f32 %v992, %v1045
    %v1050 = vmul.f32 %v996, %v1045
    %v1051 = vmul.f32 %v1000, %v1045
    %v1052 = vmul.f32 %v1004, %v1045
    %v1053 = vmul.f32 %v1008, %v1045
    %v1054 = vmul.f32 %v1012, %v1045
    %v1055 = vmul.f32 %v1016, %v1045
    %v1056 = vmul.f32 %v1020, %v1045
    %v1057 = vmul.f32 %v1024, %v1045
    %v1058 = vmul.f32 %v1028, %v1045
    %v1059 = vmul.f32 %v1032, %v1045
    %v1060 = vmul.f32 %v1036, %v1045
    %v1061 = vmul.f32 %v1040, %v1045
    %v1062 = vadd.f32 %v962, %v1046
    %v1063 = vadd.f32 %v963, %v1047
    %v1064 = vadd.f32 %v964, %v1048
    %v1065 = vadd.f32 %v965, %v1049
    %v1066 = vadd.f32 %v966, %v1050
    %v1067 = vadd.f32 %v967, %v1051
    %v1068 = vadd.f32 %v968, %v1052
    %v1069 = vadd.f32 %v969, %v1053
    %v1070 = vadd.f32 %v970, %v1054
    %v1071 = vadd.f32 %v971, %v1055
    %v1072 = vadd.f32 %v972, %v1056
    %v1073 = vadd.f32 %v973, %v1057
    %v1074 = vadd.f32 %v974, %v1058
    %v1075 = vadd.f32 %v975, %v1059
    %v1076 = vadd.f32 %v976, %v1060
    %v1077 = vadd.f32 %v977, %v1061
    %1078 = vset.pattern.permute.xlu0 9
    %1079 = vperm.xlu0 %1078, %v32
    %v1080 = vpop.permute.xlu0 %1079
    %1082 = vset.pattern.permute.xlu0 9
    %1083 = vperm.xlu0 %1082, %v33
    %v1084 = vpop.permute.xlu0 %1083
    %1086 = vset.pattern.permute.xlu0 9
    %1087 = vperm.xlu0 %1086, %v34
    %v1088 = vpop.permute.xlu0 %1087
    %1090 = vset.pattern.permute.xlu0 9
    %1091 = vperm.xlu0 %1090, %v35
    %v1092 = vpop.permute.xlu0 %1091
    %1094 = vset.pattern.permute.xlu0 9
    %1095 = vperm.xlu0 %1094, %v36
    %v1096 = vpop.permute.xlu0 %1095
    %1098 = vset.pattern.permute.xlu0 9
    %1099 = vperm.xlu0 %1098, %v37
    %v1100 = vpop.permute.xlu0 %1099
    %1102 = vset.pattern.permute.xlu0 9
    %1103 = vperm.xlu0 %1102, %v38
    %v1104 = vpop.permute.xlu0 %1103
    %1106 = vset.pattern.permute.xlu0 9
    %1107 = vperm.xlu0 %1106, %v39
    %v1108 = vpop.permute.xlu0 %1107
    %1110 = vset.pattern.permute.xlu0 9
    %1111 = vperm.xlu0 %1110, %v40
    %v1112 = vpop.permute.xlu0 %1111
    %1114 = vset.pattern.permute.xlu0 9
    %1115 = vperm.xlu0 %1114, %v41
    %v1116 = vpop.permute.xlu0 %1115
    %1118 = vset.pattern.permute.xlu0 9
    %1119 = vperm.xlu0 %1118, %v42
    %v1120 = vpop.permute.xlu0 %1119
    %1122 = vset.pattern.permute.xlu0 9
    %1123 = vperm.xlu0 %1122, %v43
    %v1124 = vpop.permute.xlu0 %1123
    %1126 = vset.pattern.permute.xlu0 9
    %1127 = vperm.xlu0 %1126, %v44
    %v1128 = vpop.permute.xlu0 %1127
    %1130 = vset.pattern.permute.xlu0 9
    %1131 = vperm.xlu0 %1130, %v45
    %v1132 = vpop.permute.xlu0 %1131
    %1134 = vset.pattern.permute.xlu0 9
    %1135 = vperm.xlu0 %1134, %v46
    %v1136 = vpop.permute.xlu0 %1135
    %1138 = vset.pattern.permute.xlu0 9
    %1139 = vperm.xlu0 %1138, %v47
    %v1140 = vpop.permute.xlu0 %1139
    %v1142 = vlaneseq
    %v1143 = vshrl.u32 %v1142, 7
    %v1144 = vsub.s32 1, %v1143
    %v1145 = vrot.slane %v31, %v1144
    %v1146 = vmul.f32 %v1080, %v1145
    %v1147 = vmul.f32 %v1084, %v1145
    %v1148 = vmul.f32 %v1088, %v1145
    %v1149 = vmul.f32 %v1092, %v1145
    %v1150 = vmul.f32 %v1096, %v1145
    %v1151 = vmul.f32 %v1100, %v1145
    %v1152 = vmul.f32 %v1104, %v1145
    %v1153 = vmul.f32 %v1108, %v1145
    %v1154 = vmul.f32 %v1112, %v1145
    %v1155 = vmul.f32 %v1116, %v1145
    %v1156 = vmul.f32 %v1120, %v1145
    %v1157 = vmul.f32 %v1124, %v1145
    %v1158 = vmul.f32 %v1128, %v1145
    %v1159 = vmul.f32 %v1132, %v1145
    %v1160 = vmul.f32 %v1136, %v1145
    %v1161 = vmul.f32 %v1140, %v1145
    %v1162 = vadd.f32 %v1062, %v1146
    %v1163 = vadd.f32 %v1063, %v1147
    %v1164 = vadd.f32 %v1064, %v1148
    %v1165 = vadd.f32 %v1065, %v1149
    %v1166 = vadd.f32 %v1066, %v1150
    %v1167 = vadd.f32 %v1067, %v1151
    %v1168 = vadd.f32 %v1068, %v1152
    %v1169 = vadd.f32 %v1069, %v1153
    %v1170 = vadd.f32 %v1070, %v1154
    %v1171 = vadd.f32 %v1071, %v1155
    %v1172 = vadd.f32 %v1072, %v1156
    %v1173 = vadd.f32 %v1073, %v1157
    %v1174 = vadd.f32 %v1074, %v1158
    %v1175 = vadd.f32 %v1075, %v1159
    %v1176 = vadd.f32 %v1076, %v1160
    %v1177 = vadd.f32 %v1077, %v1161
    %1178 = vset.pattern.permute.xlu0 10
    %1179 = vperm.xlu0 %1178, %v32
    %v1180 = vpop.permute.xlu0 %1179
    %1182 = vset.pattern.permute.xlu0 10
    %1183 = vperm.xlu0 %1182, %v33
    %v1184 = vpop.permute.xlu0 %1183
    %1186 = vset.pattern.permute.xlu0 10
    %1187 = vperm.xlu0 %1186, %v34
    %v1188 = vpop.permute.xlu0 %1187
    %1190 = vset.pattern.permute.xlu0 10
    %1191 = vperm.xlu0 %1190, %v35
    %v1192 = vpop.permute.xlu0 %1191
    %1194 = vset.pattern.permute.xlu0 10
    %1195 = vperm.xlu0 %1194, %v36
    %v1196 = vpop.permute.xlu0 %1195
    %1198 = vset.pattern.permute.xlu0 10
    %1199 = vperm.xlu0 %1198, %v37
    %v1200 = vpop.permute.xlu0 %1199
    %1202 = vset.pattern.permute.xlu0 10
    %1203 = vperm.xlu0 %1202, %v38
    %v1204 = vpop.permute.xlu0 %1203
    %1206 = vset.pattern.permute.xlu0 10
    %1207 = vperm.xlu0 %1206, %v39
    %v1208 = vpop.permute.xlu0 %1207
    %1210 = vset.pattern.permute.xlu0 10
    %1211 = vperm.xlu0 %1210, %v40
    %v1212 = vpop.permute.xlu0 %1211
    %1214 = vset.pattern.permute.xlu0 10
    %1215 = vperm.xlu0 %1214, %v41
    %v1216 = vpop.permute.xlu0 %1215
    %1218 = vset.pattern.permute.xlu0 10
    %1219 = vperm.xlu0 %1218, %v42
    %v1220 = vpop.permute.xlu0 %1219
    %1222 = vset.pattern.permute.xlu0 10
    %1223 = vperm.xlu0 %1222, %v43
    %v1224 = vpop.permute.xlu0 %1223
    %1226 = vset.pattern.permute.xlu0 10
    %1227 = vperm.xlu0 %1226, %v44
    %v1228 = vpop.permute.xlu0 %1227
    %1230 = vset.pattern.permute.xlu0 10
    %1231 = vperm.xlu0 %1230, %v45
    %v1232 = vpop.permute.xlu0 %1231
    %1234 = vset.pattern.permute.xlu0 10
    %1235 = vperm.xlu0 %1234, %v46
    %v1236 = vpop.permute.xlu0 %1235
    %1238 = vset.pattern.permute.xlu0 10
    %1239 = vperm.xlu0 %1238, %v47
    %v1240 = vpop.permute.xlu0 %1239
    %v1242 = vlaneseq
    %v1243 = vshrl.u32 %v1242, 7
    %v1244 = vsub.s32 2, %v1243
    %v1245 = vrot.slane %v31, %v1244
    %v1246 = vmul.f32 %v1180, %v1245
    %v1247 = vmul.f32 %v1184, %v1245
    %v1248 = vmul.f32 %v1188, %v1245
    %v1249 = vmul.f32 %v1192, %v1245
    %v1250 = vmul.f32 %v1196, %v1245
    %v1251 = vmul.f32 %v1200, %v1245
    %v1252 = vmul.f32 %v1204, %v1245
    %v1253 = vmul.f32 %v1208, %v1245
    %v1254 = vmul.f32 %v1212, %v1245
    %v1255 = vmul.f32 %v1216, %v1245
    %v1256 = vmul.f32 %v1220, %v1245
    %v1257 = vmul.f32 %v1224, %v1245
    %v1258 = vmul.f32 %v1228, %v1245
    %v1259 = vmul.f32 %v1232, %v1245
    %v1260 = vmul.f32 %v1236, %v1245
    %v1261 = vmul.f32 %v1240, %v1245
    %v1262 = vadd.f32 %v1162, %v1246
    %v1263 = vadd.f32 %v1163, %v1247
    %v1264 = vadd.f32 %v1164, %v1248
    %v1265 = vadd.f32 %v1165, %v1249
    %v1266 = vadd.f32 %v1166, %v1250
    %v1267 = vadd.f32 %v1167, %v1251
    %v1268 = vadd.f32 %v1168, %v1252
    %v1269 = vadd.f32 %v1169, %v1253
    %v1270 = vadd.f32 %v1170, %v1254
    %v1271 = vadd.f32 %v1171, %v1255
    %v1272 = vadd.f32 %v1172, %v1256
    %v1273 = vadd.f32 %v1173, %v1257
    %v1274 = vadd.f32 %v1174, %v1258
    %v1275 = vadd.f32 %v1175, %v1259
    %v1276 = vadd.f32 %v1176, %v1260
    %v1277 = vadd.f32 %v1177, %v1261
    %1278 = vset.pattern.permute.xlu0 11
    %1279 = vperm.xlu0 %1278, %v32
    %v1280 = vpop.permute.xlu0 %1279
    %1282 = vset.pattern.permute.xlu0 11
    %1283 = vperm.xlu0 %1282, %v33
    %v1284 = vpop.permute.xlu0 %1283
    %1286 = vset.pattern.permute.xlu0 11
    %1287 = vperm.xlu0 %1286, %v34
    %v1288 = vpop.permute.xlu0 %1287
    %1290 = vset.pattern.permute.xlu0 11
    %1291 = vperm.xlu0 %1290, %v35
    %v1292 = vpop.permute.xlu0 %1291
    %1294 = vset.pattern.permute.xlu0 11
    %1295 = vperm.xlu0 %1294, %v36
    %v1296 = vpop.permute.xlu0 %1295
    %1298 = vset.pattern.permute.xlu0 11
    %1299 = vperm.xlu0 %1298, %v37
    %v1300 = vpop.permute.xlu0 %1299
    %1302 = vset.pattern.permute.xlu0 11
    %1303 = vperm.xlu0 %1302, %v38
    %v1304 = vpop.permute.xlu0 %1303
    %1306 = vset.pattern.permute.xlu0 11
    %1307 = vperm.xlu0 %1306, %v39
    %v1308 = vpop.permute.xlu0 %1307
    %1310 = vset.pattern.permute.xlu0 11
    %1311 = vperm.xlu0 %1310, %v40
    %v1312 = vpop.permute.xlu0 %1311
    %1314 = vset.pattern.permute.xlu0 11
    %1315 = vperm.xlu0 %1314, %v41
    %v1316 = vpop.permute.xlu0 %1315
    %1318 = vset.pattern.permute.xlu0 11
    %1319 = vperm.xlu0 %1318, %v42
    %v1320 = vpop.permute.xlu0 %1319
    %1322 = vset.pattern.permute.xlu0 11
    %1323 = vperm.xlu0 %1322, %v43
    %v1324 = vpop.permute.xlu0 %1323
    %1326 = vset.pattern.permute.xlu0 11
    %1327 = vperm.xlu0 %1326, %v44
    %v1328 = vpop.permute.xlu0 %1327
    %1330 = vset.pattern.permute.xlu0 11
    %1331 = vperm.xlu0 %1330, %v45
    %v1332 = vpop.permute.xlu0 %1331
    %1334 = vset.pattern.permute.xlu0 11
    %1335 = vperm.xlu0 %1334, %v46
    %v1336 = vpop.permute.xlu0 %1335
    %1338 = vset.pattern.permute.xlu0 11
    %1339 = vperm.xlu0 %1338, %v47
    %v1340 = vpop.permute.xlu0 %1339
    %v1342 = vlaneseq
    %v1343 = vshrl.u32 %v1342, 7
    %v1344 = vsub.s32 3, %v1343
    %v1345 = vrot.slane %v31, %v1344
    %v1346 = vmul.f32 %v1280, %v1345
    %v1347 = vmul.f32 %v1284, %v1345
    %v1348 = vmul.f32 %v1288, %v1345
    %v1349 = vmul.f32 %v1292, %v1345
    %v1350 = vmul.f32 %v1296, %v1345
    %v1351 = vmul.f32 %v1300, %v1345
    %v1352 = vmul.f32 %v1304, %v1345
    %v1353 = vmul.f32 %v1308, %v1345
    %v1354 = vmul.f32 %v1312, %v1345
    %v1355 = vmul.f32 %v1316, %v1345
    %v1356 = vmul.f32 %v1320, %v1345
    %v1357 = vmul.f32 %v1324, %v1345
    %v1358 = vmul.f32 %v1328, %v1345
    %v1359 = vmul.f32 %v1332, %v1345
    %v1360 = vmul.f32 %v1336, %v1345
    %v1361 = vmul.f32 %v1340, %v1345
    %v1362 = vadd.f32 %v1262, %v1346
    %v1363 = vadd.f32 %v1263, %v1347
    %v1364 = vadd.f32 %v1264, %v1348
    %v1365 = vadd.f32 %v1265, %v1349
    %v1366 = vadd.f32 %v1266, %v1350
    %v1367 = vadd.f32 %v1267, %v1351
    %v1368 = vadd.f32 %v1268, %v1352
    %v1369 = vadd.f32 %v1269, %v1353
    %v1370 = vadd.f32 %v1270, %v1354
    %v1371 = vadd.f32 %v1271, %v1355
    %v1372 = vadd.f32 %v1272, %v1356
    %v1373 = vadd.f32 %v1273, %v1357
    %v1374 = vadd.f32 %v1274, %v1358
    %v1375 = vadd.f32 %v1275, %v1359
    %v1376 = vadd.f32 %v1276, %v1360
    %v1377 = vadd.f32 %v1277, %v1361
    %v1378 = vmax.f32 %v1362, 0.0
    %v1379 = vmax.f32 %v1363, 0.0
    %v1380 = vmax.f32 %v1364, 0.0
    %v1381 = vmax.f32 %v1365, 0.0
    %v1382 = vmax.f32 %v1366, 0.0
    %v1383 = vmax.f32 %v1367, 0.0
    %v1384 = vmax.f32 %v1368, 0.0
    %v1385 = vmax.f32 %v1369, 0.0
    %v1386 = vmax.f32 %v1370, 0.0
    %v1387 = vmax.f32 %v1371, 0.0
    %v1388 = vmax.f32 %v1372, 0.0
    %v1389 = vmax.f32 %v1373, 0.0
    %v1390 = vmax.f32 %v1374, 0.0
    %v1391 = vmax.f32 %v1375, 0.0
    %v1392 = vmax.f32 %v1376, 0.0
    %v1393 = vmax.f32 %v1377, 0.0
    %v1394 = vpack.c.bf16 %v1379, %v1378
    %v1395 = vpack.c.bf16 %v1381, %v1380
    %v1396 = vpack.c.bf16 %v1383, %v1382
    %v1397 = vpack.c.bf16 %v1385, %v1384
    %v1398 = vpack.c.bf16 %v1387, %v1386
    %v1399 = vpack.c.bf16 %v1389, %v1388
    %v1400 = vpack.c.bf16 %v1391, %v1390
    %v1401 = vpack.c.bf16 %v1393, %v1392
    %1402 = vset.pattern.permute.xlu0 13
    %1403 = vperm.xlu0 %1402, %v32
    %v1404 = vpop.permute.xlu0 %1403
    %1406 = vset.pattern.permute.xlu0 13
    %1407 = vperm.xlu0 %1406, %v33
    %v1408 = vpop.permute.xlu0 %1407
    %1410 = vset.pattern.permute.xlu0 13
    %1411 = vperm.xlu0 %1410, %v34
    %v1412 = vpop.permute.xlu0 %1411
    %1414 = vset.pattern.permute.xlu0 13
    %1415 = vperm.xlu0 %1414, %v35
    %v1416 = vpop.permute.xlu0 %1415
    %1418 = vset.pattern.permute.xlu0 13
    %1419 = vperm.xlu0 %1418, %v36
    %v1420 = vpop.permute.xlu0 %1419
    %1422 = vset.pattern.permute.xlu0 13
    %1423 = vperm.xlu0 %1422, %v37
    %v1424 = vpop.permute.xlu0 %1423
    %1426 = vset.pattern.permute.xlu0 13
    %1427 = vperm.xlu0 %1426, %v38
    %v1428 = vpop.permute.xlu0 %1427
    %1430 = vset.pattern.permute.xlu0 13
    %1431 = vperm.xlu0 %1430, %v39
    %v1432 = vpop.permute.xlu0 %1431
    %1434 = vset.pattern.permute.xlu0 13
    %1435 = vperm.xlu0 %1434, %v40
    %v1436 = vpop.permute.xlu0 %1435
    %1438 = vset.pattern.permute.xlu0 13
    %1439 = vperm.xlu0 %1438, %v41
    %v1440 = vpop.permute.xlu0 %1439
    %1442 = vset.pattern.permute.xlu0 13
    %1443 = vperm.xlu0 %1442, %v42
    %v1444 = vpop.permute.xlu0 %1443
    %1446 = vset.pattern.permute.xlu0 13
    %1447 = vperm.xlu0 %1446, %v43
    %v1448 = vpop.permute.xlu0 %1447
    %1450 = vset.pattern.permute.xlu0 13
    %1451 = vperm.xlu0 %1450, %v44
    %v1452 = vpop.permute.xlu0 %1451
    %1454 = vset.pattern.permute.xlu0 13
    %1455 = vperm.xlu0 %1454, %v45
    %v1456 = vpop.permute.xlu0 %1455
    %1458 = vset.pattern.permute.xlu0 13
    %1459 = vperm.xlu0 %1458, %v46
    %v1460 = vpop.permute.xlu0 %1459
    %1462 = vset.pattern.permute.xlu0 13
    %1463 = vperm.xlu0 %1462, %v47
    %v1464 = vpop.permute.xlu0 %1463
    %v1482 = vunpack.c.l.b16 %v48
    %v1483 = vunpack.c.l.b16 %v49
    %v1484 = vunpack.c.l.b16 %v50
    %v1485 = vunpack.c.l.b16 %v51
    %v1486 = vunpack.c.l.b16 %v52
    %v1487 = vunpack.c.l.b16 %v53
    %v1488 = vunpack.c.l.b16 %v54
    %v1489 = vunpack.c.l.b16 %v55
    %v1490 = vunpack.c.l.b16 %v56
    %v1491 = vunpack.c.l.b16 %v57
    %v1492 = vunpack.c.l.b16 %v58
    %v1493 = vunpack.c.l.b16 %v59
    %v1494 = vunpack.c.l.b16 %v60
    %v1495 = vunpack.c.l.b16 %v61
    %v1496 = vunpack.c.l.b16 %v62
    %v1497 = vunpack.c.l.b16 %v63
    %v1498 = vpack.c.b16 %v1483, %v1482
    %v1499 = vpack.c.b16 %v1485, %v1484
    %v1500 = vpack.c.b16 %v1487, %v1486
    %v1501 = vpack.c.b16 %v1489, %v1488
    %v1502 = vpack.c.b16 %v1491, %v1490
    %v1503 = vpack.c.b16 %v1493, %v1492
    %v1504 = vpack.c.b16 %v1495, %v1494
    %v1505 = vpack.c.b16 %v1497, %v1496
    %1514 = vmatprep.subr.bf16.mxu0 0
    %1515 = vmatpush1.bf16.msra.mxu0 %v1394
    %1516 = vmatprep.subr.bf16.mxu0 0
    %1517 = vmatpush1.bf16.msra.mxu0 %v1395
    %1518 = vmatprep.subr.bf16.mxu0 0
    %1519 = vmatpush1.bf16.msra.mxu0 %v1396
    %1520 = vmatprep.subr.bf16.mxu0 0
    %1521 = vmatpush1.bf16.msra.mxu0 %v1397
    %1522 = vmatprep.subr.bf16.mxu0 0
    %1523 = vmatpush1.bf16.msra.mxu0 %v1398
    %1524 = vmatprep.subr.bf16.mxu0 0
    %1525 = vmatpush1.bf16.msra.mxu0 %v1399
    %1526 = vmatprep.subr.bf16.mxu0 0
    %1527 = vmatpush1.bf16.msra.mxu0 %v1400
    %1528 = vmatprep.subr.bf16.mxu0 0
    %1529 = vmatpush1.bf16.msra.mxu0 %v1401
    %1530 = vmatprep.subr.bf16.mxu0 0
    %1531 = vmatpush1.bf16.msra.mxu0 0
    %1532 = vmatprep.subr.bf16.mxu0 0
    %1533 = vmatpush1.bf16.msra.mxu0 0
    %1534 = vmatprep.subr.bf16.mxu0 0
    %1535 = vmatpush1.bf16.msra.mxu0 0
    %1536 = vmatprep.subr.bf16.mxu0 0
    %1537 = vmatpush1.bf16.msra.mxu0 0
    %1538 = vmatprep.subr.bf16.mxu0 0
    %1539 = vmatpush1.bf16.msra.mxu0 0
    %1540 = vmatprep.subr.bf16.mxu0 0
    %1541 = vmatpush1.bf16.msra.mxu0 0
    %1542 = vmatprep.subr.bf16.mxu0 0
    %1543 = vmatpush1.bf16.msra.mxu0 0
    %1544 = vmatprep.subr.bf16.mxu0 0
    %1545 = vmatpush1.bf16.msra.mxu0 0
    %1546 = vmatprep.mubr.bf16.mxu0 0
    %1547 = vmatmul.mubr.bf16.gmra.mrb[0].mxu0 %v1498
    %v1548 = vpop.f32.mrb[0].mxu0
    %v1549 = vadd.f32 %v1404, %v1548
    %v1550 = vpop.f32.mrb[0].mxu0
    %v1551 = vpop.f32.mrb[0].mxu0
    %v1552 = vadd.f32 %v1408, %v1551
    %v1553 = vpop.f32.mrb[0].mxu0
    %1554 = vmatprep.mubr.bf16.mxu0 0
    %1555 = vmatmul.mubr.bf16.gmra.mrb[0].mxu0 %v1499
    %v1556 = vpop.f32.mrb[0].mxu0
    %v1557 = vadd.f32 %v1412, %v1556
    %v1558 = vpop.f32.mrb[0].mxu0
    %v1559 = vpop.f32.mrb[0].mxu0
    %v1560 = vadd.f32 %v1416, %v1559
    %v1561 = vpop.f32.mrb[0].mxu0
    %1562 = vmatprep.mubr.bf16.mxu0 0
    %1563 = vmatmul.mubr.bf16.gmra.mrb[0].mxu0 %v1500
    %v1564 = vpop.f32.mrb[0].mxu0
    %v1565 = vadd.f32 %v1420, %v1564
    %v1566 = vpop.f32.mrb[0].mxu0
    %v1567 = vpop.f32.mrb[0].mxu0
    %v1568 = vadd.f32 %v1424, %v1567
    %v1569 = vpop.f32.mrb[0].mxu0
    %1570 = vmatprep.mubr.bf16.mxu0 0
    %1571 = vmatmul.mubr.bf16.gmra.mrb[0].mxu0 %v1501
    %v1572 = vpop.f32.mrb[0].mxu0
    %v1573 = vadd.f32 %v1428, %v1572
    %v1574 = vpop.f32.mrb[0].mxu0
    %v1575 = vpop.f32.mrb[0].mxu0
    %v1576 = vadd.f32 %v1432, %v1575
    %v1577 = vpop.f32.mrb[0].mxu0
    %1578 = vmatprep.mubr.bf16.mxu0 0
    %1579 = vmatmul.mubr.bf16.gmra.mrb[0].mxu0 %v1502
    %v1580 = vpop.f32.mrb[0].mxu0
    %v1581 = vadd.f32 %v1436, %v1580
    %v1582 = vpop.f32.mrb[0].mxu0
    %v1583 = vpop.f32.mrb[0].mxu0
    %v1584 = vadd.f32 %v1440, %v1583
    %v1585 = vpop.f32.mrb[0].mxu0
    %1586 = vmatprep.mubr.bf16.mxu0 0
    %1587 = vmatmul.mubr.bf16.gmra.mrb[0].mxu0 %v1503
    %v1588 = vpop.f32.mrb[0].mxu0
    %v1589 = vadd.f32 %v1444, %v1588
    %v1590 = vpop.f32.mrb[0].mxu0
    %v1591 = vpop.f32.mrb[0].mxu0
    %v1592 = vadd.f32 %v1448, %v1591
    %v1593 = vpop.f32.mrb[0].mxu0
    %1594 = vmatprep.mubr.bf16.mxu0 0
    %1595 = vmatmul.mubr.bf16.gmra.mrb[0].mxu0 %v1504
    %v1596 = vpop.f32.mrb[0].mxu0
    %v1597 = vadd.f32 %v1452, %v1596
    %v1598 = vpop.f32.mrb[0].mxu0
    %v1599 = vpop.f32.mrb[0].mxu0
    %v1600 = vadd.f32 %v1456, %v1599
    %v1601 = vpop.f32.mrb[0].mxu0
    %1602 = vmatprep.mubr.bf16.mxu0 0
    %1603 = vmatmul.mubr.bf16.gmra.mrb[0].mxu0 %v1505
    %v1604 = vpop.f32.mrb[0].mxu0
    %v1605 = vadd.f32 %v1460, %v1604
    %v1606 = vpop.f32.mrb[0].mxu0
    %v1607 = vpop.f32.mrb[0].mxu0
    %v1608 = vadd.f32 %v1464, %v1607
    %v1609 = vpop.f32.mrb[0].mxu0
    %1610 = vdwg.mxu0
    %v1611 = vmax.f32 %v1549, 0.0
    %v1612 = vmax.f32 %v1552, 0.0
    %v1613 = vmax.f32 %v1557, 0.0
    %v1614 = vmax.f32 %v1560, 0.0
    %v1615 = vmax.f32 %v1565, 0.0
    %v1616 = vmax.f32 %v1568, 0.0
    %v1617 = vmax.f32 %v1573, 0.0
    %v1618 = vmax.f32 %v1576, 0.0
    %v1619 = vmax.f32 %v1581, 0.0
    %v1620 = vmax.f32 %v1584, 0.0
    %v1621 = vmax.f32 %v1589, 0.0
    %v1622 = vmax.f32 %v1592, 0.0
    %v1623 = vmax.f32 %v1597, 0.0
    %v1624 = vmax.f32 %v1600, 0.0
    %v1625 = vmax.f32 %v1605, 0.0
    %v1626 = vmax.f32 %v1608, 0.0
    %v1627 = vpack.c.bf16 %v1612, %v1611
    %v1628 = vpack.c.bf16 %v1614, %v1613
    %v1629 = vpack.c.bf16 %v1616, %v1615
    %v1630 = vpack.c.bf16 %v1618, %v1617
    %v1631 = vpack.c.bf16 %v1620, %v1619
    %v1632 = vpack.c.bf16 %v1622, %v1621
    %v1633 = vpack.c.bf16 %v1624, %v1623
    %v1634 = vpack.c.bf16 %v1626, %v1625
    %1635 = vset.pattern.permute.xlu0 14
    %1636 = vperm.xlu0 %1635, %v32
    %v1637 = vpop.permute.xlu0 %1636
    %1639 = vset.pattern.permute.xlu0 14
    %1640 = vperm.xlu0 %1639, %v33
    %v1641 = vpop.permute.xlu0 %1640
    %1643 = vset.pattern.permute.xlu0 14
    %1644 = vperm.xlu0 %1643, %v34
    %v1645 = vpop.permute.xlu0 %1644
    %1647 = vset.pattern.permute.xlu0 14
    %1648 = vperm.xlu0 %1647, %v35
    %v1649 = vpop.permute.xlu0 %1648
    %1651 = vset.pattern.permute.xlu0 14
    %1652 = vperm.xlu0 %1651, %v36
    %v1653 = vpop.permute.xlu0 %1652
    %1655 = vset.pattern.permute.xlu0 14
    %1656 = vperm.xlu0 %1655, %v37
    %v1657 = vpop.permute.xlu0 %1656
    %1659 = vset.pattern.permute.xlu0 14
    %1660 = vperm.xlu0 %1659, %v38
    %v1661 = vpop.permute.xlu0 %1660
    %1663 = vset.pattern.permute.xlu0 14
    %1664 = vperm.xlu0 %1663, %v39
    %v1665 = vpop.permute.xlu0 %1664
    %1667 = vset.pattern.permute.xlu0 14
    %1668 = vperm.xlu0 %1667, %v40
    %v1669 = vpop.permute.xlu0 %1668
    %1671 = vset.pattern.permute.xlu0 14
    %1672 = vperm.xlu0 %1671, %v41
    %v1673 = vpop.permute.xlu0 %1672
    %1675 = vset.pattern.permute.xlu0 14
    %1676 = vperm.xlu0 %1675, %v42
    %v1677 = vpop.permute.xlu0 %1676
    %1679 = vset.pattern.permute.xlu0 14
    %1680 = vperm.xlu0 %1679, %v43
    %v1681 = vpop.permute.xlu0 %1680
    %1683 = vset.pattern.permute.xlu0 14
    %1684 = vperm.xlu0 %1683, %v44
    %v1685 = vpop.permute.xlu0 %1684
    %1687 = vset.pattern.permute.xlu0 14
    %1688 = vperm.xlu0 %1687, %v45
    %v1689 = vpop.permute.xlu0 %1688
    %1691 = vset.pattern.permute.xlu0 14
    %1692 = vperm.xlu0 %1691, %v46
    %v1693 = vpop.permute.xlu0 %1692
    %1695 = vset.pattern.permute.xlu0 14
    %1696 = vperm.xlu0 %1695, %v47
    %v1697 = vpop.permute.xlu0 %1696
    %v1715 = vunpack.c.l.b16 %v65
    %v1716 = vunpack.c.l.b16 %v66
    %v1717 = vunpack.c.l.b16 %v67
    %v1718 = vunpack.c.l.b16 %v68
    %v1719 = vunpack.c.l.b16 %v69
    %v1720 = vunpack.c.l.b16 %v70
    %v1721 = vunpack.c.l.b16 %v71
    %v1722 = vunpack.c.l.b16 %v72
    %v1723 = vunpack.c.l.b16 %v73
    %v1724 = vunpack.c.l.b16 %v74
    %v1725 = vunpack.c.l.b16 %v75
    %v1726 = vunpack.c.l.b16 %v76
    %v1727 = vunpack.c.l.b16 %v77
    %v1728 = vunpack.c.l.b16 %v78
    %v1729 = vunpack.c.l.b16 %v79
    %v1730 = vunpack.c.l.b16 %v80
    %v1731 = vpack.c.b16 %v1716, %v1715
    %v1732 = vpack.c.b16 %v1718, %v1717
    %v1733 = vpack.c.b16 %v1720, %v1719
    %v1734 = vpack.c.b16 %v1722, %v1721
    %v1735 = vpack.c.b16 %v1724, %v1723
    %v1736 = vpack.c.b16 %v1726, %v1725
    %v1737 = vpack.c.b16 %v1728, %v1727
    %v1738 = vpack.c.b16 %v1730, %v1729
    %1747 = vmatprep.subr.bf16.mxu0 0
    %1748 = vmatpush1.bf16.msra.mxu0 %v1627
    %1749 = vmatprep.subr.bf16.mxu0 0
    %1750 = vmatpush1.bf16.msra.mxu0 %v1628
    %1751 = vmatprep.subr.bf16.mxu0 0
    %1752 = vmatpush1.bf16.msra.mxu0 %v1629
    %1753 = vmatprep.subr.bf16.mxu0 0
    %1754 = vmatpush1.bf16.msra.mxu0 %v1630
    %1755 = vmatprep.subr.bf16.mxu0 0
    %1756 = vmatpush1.bf16.msra.mxu0 %v1631
    %1757 = vmatprep.subr.bf16.mxu0 0
    %1758 = vmatpush1.bf16.msra.mxu0 %v1632
    %1759 = vmatprep.subr.bf16.mxu0 0
    %1760 = vmatpush1.bf16.msra.mxu0 %v1633
    %1761 = vmatprep.subr.bf16.mxu0 0
    %1762 = vmatpush1.bf16.msra.mxu0 %v1634
    %1763 = vmatprep.subr.bf16.mxu0 0
    %1764 = vmatpush1.bf16.msra.mxu0 0
    %1765 = vmatprep.subr.bf16.mxu0 0
    %1766 = vmatpush1.bf16.msra.mxu0 0
    %1767 = vmatprep.subr.bf16.mxu0 0
    %1768 = vmatpush1.bf16.msra.mxu0 0
    %1769 = vmatprep.subr.bf16.mxu0 0
    %1770 = vmatpush1.bf16.msra.mxu0 0
    %1771 = vmatprep.subr.bf16.mxu0 0
    %1772 = vmatpush1.bf16.msra.mxu0 0
    %1773 = vmatprep.subr.bf16.mxu0 0
    %1774 = vmatpush1.bf16.msra.mxu0 0
    %1775 = vmatprep.subr.bf16.mxu0 0
    %1776 = vmatpush1.bf16.msra.mxu0 0
    %1777 = vmatprep.subr.bf16.mxu0 0
    %1778 = vmatpush1.bf16.msra.mxu0 0
    %1779 = vmatprep.mubr.bf16.mxu0 0
    %1780 = vmatmul.mubr.bf16.gmra.mrb[0].mxu0 %v1731
    %v1781 = vpop.f32.mrb[0].mxu0
    %v1782 = vadd.f32 %v1637, %v1781
    %v1783 = vpop.f32.mrb[0].mxu0
    %v1784 = vpop.f32.mrb[0].mxu0
    %v1785 = vadd.f32 %v1641, %v1784
    %v1786 = vpop.f32.mrb[0].mxu0
    %1787 = vmatprep.mubr.bf16.mxu0 0
    %1788 = vmatmul.mubr.bf16.gmra.mrb[0].mxu0 %v1732
    %v1789 = vpop.f32.mrb[0].mxu0
    %v1790 = vadd.f32 %v1645, %v1789
    %v1791 = vpop.f32.mrb[0].mxu0
    %v1792 = vpop.f32.mrb[0].mxu0
    %v1793 = vadd.f32 %v1649, %v1792
    %v1794 = vpop.f32.mrb[0].mxu0
    %1795 = vmatprep.mubr.bf16.mxu0 0
    %1796 = vmatmul.mubr.bf16.gmra.mrb[0].mxu0 %v1733
    %v1797 = vpop.f32.mrb[0].mxu0
    %v1798 = vadd.f32 %v1653, %v1797
    %v1799 = vpop.f32.mrb[0].mxu0
    %v1800 = vpop.f32.mrb[0].mxu0
    %v1801 = vadd.f32 %v1657, %v1800
    %v1802 = vpop.f32.mrb[0].mxu0
    %1803 = vmatprep.mubr.bf16.mxu0 0
    %1804 = vmatmul.mubr.bf16.gmra.mrb[0].mxu0 %v1734
    %v1805 = vpop.f32.mrb[0].mxu0
    %v1806 = vadd.f32 %v1661, %v1805
    %v1807 = vpop.f32.mrb[0].mxu0
    %v1808 = vpop.f32.mrb[0].mxu0
    %v1809 = vadd.f32 %v1665, %v1808
    %v1810 = vpop.f32.mrb[0].mxu0
    %1811 = vmatprep.mubr.bf16.mxu0 0
    %1812 = vmatmul.mubr.bf16.gmra.mrb[0].mxu0 %v1735
    %v1813 = vpop.f32.mrb[0].mxu0
    %v1814 = vadd.f32 %v1669, %v1813
    %v1815 = vpop.f32.mrb[0].mxu0
    %v1816 = vpop.f32.mrb[0].mxu0
    %v1817 = vadd.f32 %v1673, %v1816
    %v1818 = vpop.f32.mrb[0].mxu0
    %1819 = vmatprep.mubr.bf16.mxu0 0
    %1820 = vmatmul.mubr.bf16.gmra.mrb[0].mxu0 %v1736
    %v1821 = vpop.f32.mrb[0].mxu0
    %v1822 = vadd.f32 %v1677, %v1821
    %v1823 = vpop.f32.mrb[0].mxu0
    %v1824 = vpop.f32.mrb[0].mxu0
    %v1825 = vadd.f32 %v1681, %v1824
    %v1826 = vpop.f32.mrb[0].mxu0
    %1827 = vmatprep.mubr.bf16.mxu0 0
    %1828 = vmatmul.mubr.bf16.gmra.mrb[0].mxu0 %v1737
    %v1829 = vpop.f32.mrb[0].mxu0
    %v1830 = vadd.f32 %v1685, %v1829
    %v1831 = vpop.f32.mrb[0].mxu0
    %v1832 = vpop.f32.mrb[0].mxu0
    %v1833 = vadd.f32 %v1689, %v1832
    %v1834 = vpop.f32.mrb[0].mxu0
    %1835 = vmatprep.mubr.bf16.mxu0 0
    %1836 = vmatmul.mubr.bf16.gmra.mrb[0].mxu0 %v1738
    %v1837 = vpop.f32.mrb[0].mxu0
    %v1838 = vadd.f32 %v1693, %v1837
    %v1839 = vpop.f32.mrb[0].mxu0
    %v1840 = vpop.f32.mrb[0].mxu0
    %v1841 = vadd.f32 %v1697, %v1840
    %v1842 = vpop.f32.mrb[0].mxu0
    %1843 = vdwg.mxu0
    %v1844 = vmax.f32 %v1782, 0.0
    %v1845 = vmax.f32 %v1785, 0.0
    %v1846 = vmax.f32 %v1790, 0.0
    %v1847 = vmax.f32 %v1793, 0.0
    %v1848 = vmax.f32 %v1798, 0.0
    %v1849 = vmax.f32 %v1801, 0.0
    %v1850 = vmax.f32 %v1806, 0.0
    %v1851 = vmax.f32 %v1809, 0.0
    %v1852 = vmax.f32 %v1814, 0.0
    %v1853 = vmax.f32 %v1817, 0.0
    %v1854 = vmax.f32 %v1822, 0.0
    %v1855 = vmax.f32 %v1825, 0.0
    %v1856 = vmax.f32 %v1830, 0.0
    %v1857 = vmax.f32 %v1833, 0.0
    %v1858 = vmax.f32 %v1838, 0.0
    %v1859 = vmax.f32 %v1841, 0.0
    %v1860 = vpack.c.bf16 %v1845, %v1844
    %v1861 = vpack.c.bf16 %v1847, %v1846
    %v1862 = vpack.c.bf16 %v1849, %v1848
    %v1863 = vpack.c.bf16 %v1851, %v1850
    %v1864 = vpack.c.bf16 %v1853, %v1852
    %v1865 = vpack.c.bf16 %v1855, %v1854
    %v1866 = vpack.c.bf16 %v1857, %v1856
    %v1867 = vpack.c.bf16 %v1859, %v1858
    %1868 = vmatprep.subr.bf16.mxu0 0
    %1869 = vmatpush1.bf16.msra.mxu0 %v1860
    %1870 = vmatprep.subr.bf16.mxu0 0
    %1871 = vmatpush1.bf16.msra.mxu0 %v1861
    %1872 = vmatprep.subr.bf16.mxu0 0
    %1873 = vmatpush1.bf16.msra.mxu0 %v1862
    %1874 = vmatprep.subr.bf16.mxu0 0
    %1875 = vmatpush1.bf16.msra.mxu0 %v1863
    %1876 = vmatprep.subr.bf16.mxu0 0
    %1877 = vmatpush1.bf16.msra.mxu0 %v1864
    %1878 = vmatprep.subr.bf16.mxu0 0
    %1879 = vmatpush1.bf16.msra.mxu0 %v1865
    %1880 = vmatprep.subr.bf16.mxu0 0
    %1881 = vmatpush1.bf16.msra.mxu0 %v1866
    %1882 = vmatprep.subr.bf16.mxu0 0
    %1883 = vmatpush1.bf16.msra.mxu0 %v1867
    %1884 = vmatprep.subr.bf16.mxu0 0
    %1885 = vmatpush1.bf16.msra.mxu0 0
    %1886 = vmatprep.subr.bf16.mxu0 0
    %1887 = vmatpush1.bf16.msra.mxu0 0
    %1888 = vmatprep.subr.bf16.mxu0 0
    %1889 = vmatpush1.bf16.msra.mxu0 0
    %1890 = vmatprep.subr.bf16.mxu0 0
    %1891 = vmatpush1.bf16.msra.mxu0 0
    %1892 = vmatprep.subr.bf16.mxu0 0
    %1893 = vmatpush1.bf16.msra.mxu0 0
    %1894 = vmatprep.subr.bf16.mxu0 0
    %1895 = vmatpush1.bf16.msra.mxu0 0
    %1896 = vmatprep.subr.bf16.mxu0 0
    %1897 = vmatpush1.bf16.msra.mxu0 0
    %1898 = vmatprep.subr.bf16.mxu0 0
    %1899 = vmatpush1.bf16.msra.mxu0 0
    %1900 = vmatprep.mubr.bf16.mxu0 0
    %1901 = vmatmul.mubr.bf16.gmra.mrb[0].mxu0 %v1731
    %v1902 = vpop.f32.mrb[0].mxu0
    %v1903 = vadd.f32 %v1637, %v1902
    %v1904 = vpop.f32.mrb[0].mxu0
    %v1905 = vpop.f32.mrb[0].mxu0
    %v1906 = vadd.f32 %v1641, %v1905
    %v1907 = vpop.f32.mrb[0].mxu0
    %1908 = vmatprep.mubr.bf16.mxu0 0
    %1909 = vmatmul.mubr.bf16.gmra.mrb[0].mxu0 %v1732
    %v1910 = vpop.f32.mrb[0].mxu0
    %v1911 = vadd.f32 %v1645, %v1910
    %v1912 = vpop.f32.mrb[0].mxu0
    %v1913 = vpop.f32.mrb[0].mxu0
    %v1914 = vadd.f32 %v1649, %v1913
    %v1915 = vpop.f32.mrb[0].mxu0
    %1916 = vmatprep.mubr.bf16.mxu0 0
    %1917 = vmatmul.mubr.bf16.gmra.mrb[0].mxu0 %v1733
    %v1918 = vpop.f32.mrb[0].mxu0
    %v1919 = vadd.f32 %v1653, %v1918
    %v1920 = vpop.f32.mrb[0].mxu0
    %v1921 = vpop.f32.mrb[0].mxu0
    %v1922 = vadd.f32 %v1657, %v1921
    %v1923 = vpop.f32.mrb[0].mxu0
    %1924 = vmatprep.mubr.bf16.mxu0 0
    %1925 = vmatmul.mubr.bf16.gmra.mrb[0].mxu0 %v1734
    %v1926 = vpop.f32.mrb[0].mxu0
    %v1927 = vadd.f32 %v1661, %v1926
    %v1928 = vpop.f32.mrb[0].mxu0
    %v1929 = vpop.f32.mrb[0].mxu0
    %v1930 = vadd.f32 %v1665, %v1929
    %v1931 = vpop.f32.mrb[0].mxu0
    %1932 = vmatprep.mubr.bf16.mxu0 0
    %1933 = vmatmul.mubr.bf16.gmra.mrb[0].mxu0 %v1735
    %v1934 = vpop.f32.mrb[0].mxu0
    %v1935 = vadd.f32 %v1669, %v1934
    %v1936 = vpop.f32.mrb[0].mxu0
    %v1937 = vpop.f32.mrb[0].mxu0
    %v1938 = vadd.f32 %v1673, %v1937
    %v1939 = vpop.f32.mrb[0].mxu0
    %1940 = vmatprep.mubr.bf16.mxu0 0
    %1941 = vmatmul.mubr.bf16.gmra.mrb[0].mxu0 %v1736
    %v1942 = vpop.f32.mrb[0].mxu0
    %v1943 = vadd.f32 %v1677, %v1942
    %v1944 = vpop.f32.mrb[0].mxu0
    %v1945 = vpop.f32.mrb[0].mxu0
    %v1946 = vadd.f32 %v1681, %v1945
    %v1947 = vpop.f32.mrb[0].mxu0
    %1948 = vmatprep.mubr.bf16.mxu0 0
    %1949 = vmatmul.mubr.bf16.gmra.mrb[0].mxu0 %v1737
    %v1950 = vpop.f32.mrb[0].mxu0
    %v1951 = vadd.f32 %v1685, %v1950
    %v1952 = vpop.f32.mrb[0].mxu0
    %v1953 = vpop.f32.mrb[0].mxu0
    %v1954 = vadd.f32 %v1689, %v1953
    %v1955 = vpop.f32.mrb[0].mxu0
    %1956 = vmatprep.mubr.bf16.mxu0 0
    %1957 = vmatmul.mubr.bf16.gmra.mrb[0].mxu0 %v1738
    %v1958 = vpop.f32.mrb[0].mxu0
    %v1959 = vadd.f32 %v1693, %v1958
    %v1960 = vpop.f32.mrb[0].mxu0
    %v1961 = vpop.f32.mrb[0].mxu0
    %v1962 = vadd.f32 %v1697, %v1961
    %v1963 = vpop.f32.mrb[0].mxu0
    %1964 = vdwg.mxu0
    %v1965 = vmax.f32 %v1903, 0.0
    %v1966 = vmax.f32 %v1906, 0.0
    %v1967 = vmax.f32 %v1911, 0.0
    %v1968 = vmax.f32 %v1914, 0.0
    %v1969 = vmax.f32 %v1919, 0.0
    %v1970 = vmax.f32 %v1922, 0.0
    %v1971 = vmax.f32 %v1927, 0.0
    %v1972 = vmax.f32 %v1930, 0.0
    %v1973 = vmax.f32 %v1935, 0.0
    %v1974 = vmax.f32 %v1938, 0.0
    %v1975 = vmax.f32 %v1943, 0.0
    %v1976 = vmax.f32 %v1946, 0.0
    %v1977 = vmax.f32 %v1951, 0.0
    %v1978 = vmax.f32 %v1954, 0.0
    %v1979 = vmax.f32 %v1959, 0.0
    %v1980 = vmax.f32 %v1962, 0.0
    %v1981 = vpack.c.bf16 %v1966, %v1965
    %v1982 = vpack.c.bf16 %v1968, %v1967
    %v1983 = vpack.c.bf16 %v1970, %v1969
    %v1984 = vpack.c.bf16 %v1972, %v1971
    %v1985 = vpack.c.bf16 %v1974, %v1973
    %v1986 = vpack.c.bf16 %v1976, %v1975
    %v1987 = vpack.c.bf16 %v1978, %v1977
    %v1988 = vpack.c.bf16 %v1980, %v1979
    %1989 = vmatprep.subr.bf16.mxu0 0
    %1990 = vmatpush1.bf16.msra.mxu0 %v1981
    %1991 = vmatprep.subr.bf16.mxu0 0
    %1992 = vmatpush1.bf16.msra.mxu0 %v1982
    %1993 = vmatprep.subr.bf16.mxu0 0
    %1994 = vmatpush1.bf16.msra.mxu0 %v1983
    %1995 = vmatprep.subr.bf16.mxu0 0
    %1996 = vmatpush1.bf16.msra.mxu0 %v1984
    %1997 = vmatprep.subr.bf16.mxu0 0
    %1998 = vmatpush1.bf16.msra.mxu0 %v1985
    %1999 = vmatprep.subr.bf16.mxu0 0
    %2000 = vmatpush1.bf16.msra.mxu0 %v1986
    %2001 = vmatprep.subr.bf16.mxu0 0
    %2002 = vmatpush1.bf16.msra.mxu0 %v1987
    %2003 = vmatprep.subr.bf16.mxu0 0
    %2004 = vmatpush1.bf16.msra.mxu0 %v1988
    %2005 = vmatprep.subr.bf16.mxu0 0
    %2006 = vmatpush1.bf16.msra.mxu0 0
    %2007 = vmatprep.subr.bf16.mxu0 0
    %2008 = vmatpush1.bf16.msra.mxu0 0
    %2009 = vmatprep.subr.bf16.mxu0 0
    %2010 = vmatpush1.bf16.msra.mxu0 0
    %2011 = vmatprep.subr.bf16.mxu0 0
    %2012 = vmatpush1.bf16.msra.mxu0 0
    %2013 = vmatprep.subr.bf16.mxu0 0
    %2014 = vmatpush1.bf16.msra.mxu0 0
    %2015 = vmatprep.subr.bf16.mxu0 0
    %2016 = vmatpush1.bf16.msra.mxu0 0
    %2017 = vmatprep.subr.bf16.mxu0 0
    %2018 = vmatpush1.bf16.msra.mxu0 0
    %2019 = vmatprep.subr.bf16.mxu0 0
    %2020 = vmatpush1.bf16.msra.mxu0 0
    %2021 = vmatprep.mubr.bf16.mxu0 0
    %2022 = vmatmul.mubr.bf16.gmra.mrb[0].mxu0 %v1731
    %v2023 = vpop.f32.mrb[0].mxu0
    %v2024 = vadd.f32 %v1637, %v2023
    %v2025 = vpop.f32.mrb[0].mxu0
    %v2026 = vpop.f32.mrb[0].mxu0
    %v2027 = vadd.f32 %v1641, %v2026
    %v2028 = vpop.f32.mrb[0].mxu0
    %2029 = vmatprep.mubr.bf16.mxu0 0
    %2030 = vmatmul.mubr.bf16.gmra.mrb[0].mxu0 %v1732
    %v2031 = vpop.f32.mrb[0].mxu0
    %v2032 = vadd.f32 %v1645, %v2031
    %v2033 = vpop.f32.mrb[0].mxu0
    %v2034 = vpop.f32.mrb[0].mxu0
    %v2035 = vadd.f32 %v1649, %v2034
    %v2036 = vpop.f32.mrb[0].mxu0
    %2037 = vmatprep.mubr.bf16.mxu0 0
    %2038 = vmatmul.mubr.bf16.gmra.mrb[0].mxu0 %v1733
    %v2039 = vpop.f32.mrb[0].mxu0
    %v2040 = vadd.f32 %v1653, %v2039
    %v2041 = vpop.f32.mrb[0].mxu0
    %v2042 = vpop.f32.mrb[0].mxu0
    %v2043 = vadd.f32 %v1657, %v2042
    %v2044 = vpop.f32.mrb[0].mxu0
    %2045 = vmatprep.mubr.bf16.mxu0 0
    %2046 = vmatmul.mubr.bf16.gmra.mrb[0].mxu0 %v1734
    %v2047 = vpop.f32.mrb[0].mxu0
    %v2048 = vadd.f32 %v1661, %v2047
    %v2049 = vpop.f32.mrb[0].mxu0
    %v2050 = vpop.f32.mrb[0].mxu0
    %v2051 = vadd.f32 %v1665, %v2050
    %v2052 = vpop.f32.mrb[0].mxu0
    %2053 = vmatprep.mubr.bf16.mxu0 0
    %2054 = vmatmul.mubr.bf16.gmra.mrb[0].mxu0 %v1735
    %v2055 = vpop.f32.mrb[0].mxu0
    %v2056 = vadd.f32 %v1669, %v2055
    %v2057 = vpop.f32.mrb[0].mxu0
    %v2058 = vpop.f32.mrb[0].mxu0
    %v2059 = vadd.f32 %v1673, %v2058
    %v2060 = vpop.f32.mrb[0].mxu0
    %2061 = vmatprep.mubr.bf16.mxu0 0
    %2062 = vmatmul.mubr.bf16.gmra.mrb[0].mxu0 %v1736
    %v2063 = vpop.f32.mrb[0].mxu0
    %v2064 = vadd.f32 %v1677, %v2063
    %v2065 = vpop.f32.mrb[0].mxu0
    %v2066 = vpop.f32.mrb[0].mxu0
    %v2067 = vadd.f32 %v1681, %v2066
    %v2068 = vpop.f32.mrb[0].mxu0
    %2069 = vmatprep.mubr.bf16.mxu0 0
    %2070 = vmatmul.mubr.bf16.gmra.mrb[0].mxu0 %v1737
    %v2071 = vpop.f32.mrb[0].mxu0
    %v2072 = vadd.f32 %v1685, %v2071
    %v2073 = vpop.f32.mrb[0].mxu0
    %v2074 = vpop.f32.mrb[0].mxu0
    %v2075 = vadd.f32 %v1689, %v2074
    %v2076 = vpop.f32.mrb[0].mxu0
    %2077 = vmatprep.mubr.bf16.mxu0 0
    %2078 = vmatmul.mubr.bf16.gmra.mrb[0].mxu0 %v1738
    %v2079 = vpop.f32.mrb[0].mxu0
    %v2080 = vadd.f32 %v1693, %v2079
    %v2081 = vpop.f32.mrb[0].mxu0
    %v2082 = vpop.f32.mrb[0].mxu0
    %v2083 = vadd.f32 %v1697, %v2082
    %v2084 = vpop.f32.mrb[0].mxu0
    %2085 = vdwg.mxu0
    %v2086 = vmax.f32 %v2024, 0.0
    %v2087 = vmax.f32 %v2027, 0.0
    %v2088 = vmax.f32 %v2032, 0.0
    %v2089 = vmax.f32 %v2035, 0.0
    %v2090 = vmax.f32 %v2040, 0.0
    %v2091 = vmax.f32 %v2043, 0.0
    %v2092 = vmax.f32 %v2048, 0.0
    %v2093 = vmax.f32 %v2051, 0.0
    %v2094 = vmax.f32 %v2056, 0.0
    %v2095 = vmax.f32 %v2059, 0.0
    %v2096 = vmax.f32 %v2064, 0.0
    %v2097 = vmax.f32 %v2067, 0.0
    %v2098 = vmax.f32 %v2072, 0.0
    %v2099 = vmax.f32 %v2075, 0.0
    %v2100 = vmax.f32 %v2080, 0.0
    %v2101 = vmax.f32 %v2083, 0.0
    %v2102 = vpack.c.bf16 %v2087, %v2086
    %v2103 = vpack.c.bf16 %v2089, %v2088
    %v2104 = vpack.c.bf16 %v2091, %v2090
    %v2105 = vpack.c.bf16 %v2093, %v2092
    %v2106 = vpack.c.bf16 %v2095, %v2094
    %v2107 = vpack.c.bf16 %v2097, %v2096
    %v2108 = vpack.c.bf16 %v2099, %v2098
    %v2109 = vpack.c.bf16 %v2101, %v2100
    %2110 = vset.pattern.permute.xlu0 15
    %2111 = vperm.xlu0 %2110, %v32
    %v2112 = vpop.permute.xlu0 %2111
    %2114 = vset.pattern.permute.xlu0 15
    %2115 = vperm.xlu0 %2114, %v33
    %v2116 = vpop.permute.xlu0 %2115
    %2118 = vset.pattern.permute.xlu0 15
    %2119 = vperm.xlu0 %2118, %v34
    %v2120 = vpop.permute.xlu0 %2119
    %2122 = vset.pattern.permute.xlu0 15
    %2123 = vperm.xlu0 %2122, %v35
    %v2124 = vpop.permute.xlu0 %2123
    %2126 = vset.pattern.permute.xlu0 15
    %2127 = vperm.xlu0 %2126, %v36
    %v2128 = vpop.permute.xlu0 %2127
    %2130 = vset.pattern.permute.xlu0 15
    %2131 = vperm.xlu0 %2130, %v37
    %v2132 = vpop.permute.xlu0 %2131
    %2134 = vset.pattern.permute.xlu0 15
    %2135 = vperm.xlu0 %2134, %v38
    %v2136 = vpop.permute.xlu0 %2135
    %2138 = vset.pattern.permute.xlu0 15
    %2139 = vperm.xlu0 %2138, %v39
    %v2140 = vpop.permute.xlu0 %2139
    %2142 = vset.pattern.permute.xlu0 15
    %2143 = vperm.xlu0 %2142, %v40
    %v2144 = vpop.permute.xlu0 %2143
    %2146 = vset.pattern.permute.xlu0 15
    %2147 = vperm.xlu0 %2146, %v41
    %v2148 = vpop.permute.xlu0 %2147
    %2150 = vset.pattern.permute.xlu0 15
    %2151 = vperm.xlu0 %2150, %v42
    %v2152 = vpop.permute.xlu0 %2151
    %2154 = vset.pattern.permute.xlu0 15
    %2155 = vperm.xlu0 %2154, %v43
    %v2156 = vpop.permute.xlu0 %2155
    %2158 = vset.pattern.permute.xlu0 15
    %2159 = vperm.xlu0 %2158, %v44
    %v2160 = vpop.permute.xlu0 %2159
    %2162 = vset.pattern.permute.xlu0 15
    %2163 = vperm.xlu0 %2162, %v45
    %v2164 = vpop.permute.xlu0 %2163
    %2166 = vset.pattern.permute.xlu0 15
    %2167 = vperm.xlu0 %2166, %v46
    %v2168 = vpop.permute.xlu0 %2167
    %2170 = vset.pattern.permute.xlu0 15
    %2171 = vperm.xlu0 %2170, %v47
    %v2172 = vpop.permute.xlu0 %2171
    %v2190 = vunpack.c.l.b16 %v82
    %v2191 = vunpack.c.l.b16 %v83
    %v2192 = vunpack.c.l.b16 %v84
    %v2193 = vunpack.c.l.b16 %v85
    %v2194 = vunpack.c.l.b16 %v86
    %v2195 = vunpack.c.l.b16 %v87
    %v2196 = vunpack.c.l.b16 %v88
    %v2197 = vunpack.c.l.b16 %v89
    %v2198 = vunpack.c.l.b16 %v90
    %v2199 = vunpack.c.l.b16 %v91
    %v2200 = vunpack.c.l.b16 %v92
    %v2201 = vunpack.c.l.b16 %v93
    %v2202 = vunpack.c.l.b16 %v94
    %v2203 = vunpack.c.l.b16 %v95
    %v2204 = vunpack.c.l.b16 %v96
    %v2205 = vunpack.c.l.b16 %v97
    %v2206 = vpack.c.b16 %v2191, %v2190
    %v2207 = vpack.c.b16 %v2193, %v2192
    %v2208 = vpack.c.b16 %v2195, %v2194
    %v2209 = vpack.c.b16 %v2197, %v2196
    %v2210 = vpack.c.b16 %v2199, %v2198
    %v2211 = vpack.c.b16 %v2201, %v2200
    %v2212 = vpack.c.b16 %v2203, %v2202
    %v2213 = vpack.c.b16 %v2205, %v2204
    %2222 = vmatprep.subr.bf16.mxu0 0
    %2223 = vmatpush1.bf16.msra.mxu0 %v2102
    %2224 = vmatprep.subr.bf16.mxu0 0
    %2225 = vmatpush1.bf16.msra.mxu0 %v2103
    %2226 = vmatprep.subr.bf16.mxu0 0
    %2227 = vmatpush1.bf16.msra.mxu0 %v2104
    %2228 = vmatprep.subr.bf16.mxu0 0
    %2229 = vmatpush1.bf16.msra.mxu0 %v2105
    %2230 = vmatprep.subr.bf16.mxu0 0
    %2231 = vmatpush1.bf16.msra.mxu0 %v2106
    %2232 = vmatprep.subr.bf16.mxu0 0
    %2233 = vmatpush1.bf16.msra.mxu0 %v2107
    %2234 = vmatprep.subr.bf16.mxu0 0
    %2235 = vmatpush1.bf16.msra.mxu0 %v2108
    %2236 = vmatprep.subr.bf16.mxu0 0
    %2237 = vmatpush1.bf16.msra.mxu0 %v2109
    %2238 = vmatprep.subr.bf16.mxu0 0
    %2239 = vmatpush1.bf16.msra.mxu0 0
    %2240 = vmatprep.subr.bf16.mxu0 0
    %2241 = vmatpush1.bf16.msra.mxu0 0
    %2242 = vmatprep.subr.bf16.mxu0 0
    %2243 = vmatpush1.bf16.msra.mxu0 0
    %2244 = vmatprep.subr.bf16.mxu0 0
    %2245 = vmatpush1.bf16.msra.mxu0 0
    %2246 = vmatprep.subr.bf16.mxu0 0
    %2247 = vmatpush1.bf16.msra.mxu0 0
    %2248 = vmatprep.subr.bf16.mxu0 0
    %2249 = vmatpush1.bf16.msra.mxu0 0
    %2250 = vmatprep.subr.bf16.mxu0 0
    %2251 = vmatpush1.bf16.msra.mxu0 0
    %2252 = vmatprep.subr.bf16.mxu0 0
    %2253 = vmatpush1.bf16.msra.mxu0 0
    %2254 = vmatprep.mubr.bf16.mxu0 0
    %2255 = vmatmul.mubr.bf16.gmra.mrb[0].mxu0 %v2206
    %v2256 = vpop.f32.mrb[0].mxu0
    %v2257 = vadd.f32 %v2112, %v2256
    %v2258 = vpop.f32.mrb[0].mxu0
    %v2259 = vpop.f32.mrb[0].mxu0
    %v2260 = vadd.f32 %v2116, %v2259
    %v2261 = vpop.f32.mrb[0].mxu0
    %2262 = vmatprep.mubr.bf16.mxu0 0
    %2263 = vmatmul.mubr.bf16.gmra.mrb[0].mxu0 %v2207
    %v2264 = vpop.f32.mrb[0].mxu0
    %v2265 = vadd.f32 %v2120, %v2264
    %v2266 = vpop.f32.mrb[0].mxu0
    %v2267 = vpop.f32.mrb[0].mxu0
    %v2268 = vadd.f32 %v2124, %v2267
    %v2269 = vpop.f32.mrb[0].mxu0
    %2270 = vmatprep.mubr.bf16.mxu0 0
    %2271 = vmatmul.mubr.bf16.gmra.mrb[0].mxu0 %v2208
    %v2272 = vpop.f32.mrb[0].mxu0
    %v2273 = vadd.f32 %v2128, %v2272
    %v2274 = vpop.f32.mrb[0].mxu0
    %v2275 = vpop.f32.mrb[0].mxu0
    %v2276 = vadd.f32 %v2132, %v2275
    %v2277 = vpop.f32.mrb[0].mxu0
    %2278 = vmatprep.mubr.bf16.mxu0 0
    %2279 = vmatmul.mubr.bf16.gmra.mrb[0].mxu0 %v2209
    %v2280 = vpop.f32.mrb[0].mxu0
    %v2281 = vadd.f32 %v2136, %v2280
    %v2282 = vpop.f32.mrb[0].mxu0
    %v2283 = vpop.f32.mrb[0].mxu0
    %v2284 = vadd.f32 %v2140, %v2283
    %v2285 = vpop.f32.mrb[0].mxu0
    %2286 = vmatprep.mubr.bf16.mxu0 0
    %2287 = vmatmul.mubr.bf16.gmra.mrb[0].mxu0 %v2210
    %v2288 = vpop.f32.mrb[0].mxu0
    %v2289 = vadd.f32 %v2144, %v2288
    %v2290 = vpop.f32.mrb[0].mxu0
    %v2291 = vpop.f32.mrb[0].mxu0
    %v2292 = vadd.f32 %v2148, %v2291
    %v2293 = vpop.f32.mrb[0].mxu0
    %2294 = vmatprep.mubr.bf16.mxu0 0
    %2295 = vmatmul.mubr.bf16.gmra.mrb[0].mxu0 %v2211
    %v2296 = vpop.f32.mrb[0].mxu0
    %v2297 = vadd.f32 %v2152, %v2296
    %v2298 = vpop.f32.mrb[0].mxu0
    %v2299 = vpop.f32.mrb[0].mxu0
    %v2300 = vadd.f32 %v2156, %v2299
    %v2301 = vpop.f32.mrb[0].mxu0
    %2302 = vmatprep.mubr.bf16.mxu0 0
    %2303 = vmatmul.mubr.bf16.gmra.mrb[0].mxu0 %v2212
    %v2304 = vpop.f32.mrb[0].mxu0
    %v2305 = vadd.f32 %v2160, %v2304
    %v2306 = vpop.f32.mrb[0].mxu0
    %v2307 = vpop.f32.mrb[0].mxu0
    %v2308 = vadd.f32 %v2164, %v2307
    %v2309 = vpop.f32.mrb[0].mxu0
    %2310 = vmatprep.mubr.bf16.mxu0 0
    %2311 = vmatmul.mubr.bf16.gmra.mrb[0].mxu0 %v2213
    %v2312 = vpop.f32.mrb[0].mxu0
    %v2313 = vadd.f32 %v2168, %v2312
    %v2314 = vpop.f32.mrb[0].mxu0
    %v2315 = vpop.f32.mrb[0].mxu0
    %v2316 = vadd.f32 %v2172, %v2315
    %v2317 = vpop.f32.mrb[0].mxu0
    %2318 = vdwg.mxu0
    %v2319 = vmax.f32 %v2257, 0.0
    %v2320 = vmax.f32 %v2260, 0.0
    %v2321 = vmax.f32 %v2265, 0.0
    %v2322 = vmax.f32 %v2268, 0.0
    %v2323 = vmax.f32 %v2273, 0.0
    %v2324 = vmax.f32 %v2276, 0.0
    %v2325 = vmax.f32 %v2281, 0.0
    %v2326 = vmax.f32 %v2284, 0.0
    %v2327 = vmax.f32 %v2289, 0.0
    %v2328 = vmax.f32 %v2292, 0.0
    %v2329 = vmax.f32 %v2297, 0.0
    %v2330 = vmax.f32 %v2300, 0.0
    %v2331 = vmax.f32 %v2305, 0.0
    %v2332 = vmax.f32 %v2308, 0.0
    %v2333 = vmax.f32 %v2313, 0.0
    %v2334 = vmax.f32 %v2316, 0.0
    %2335 = vset.pattern.permute.xlu0 16
    %2336 = vperm.xlu0 %2335, %v32
    %v2337 = vpop.permute.xlu0 %2336
    %2339 = vset.pattern.permute.xlu0 16
    %2340 = vperm.xlu0 %2339, %v33
    %v2341 = vpop.permute.xlu0 %2340
    %2343 = vset.pattern.permute.xlu0 16
    %2344 = vperm.xlu0 %2343, %v34
    %v2345 = vpop.permute.xlu0 %2344
    %2347 = vset.pattern.permute.xlu0 16
    %2348 = vperm.xlu0 %2347, %v35
    %v2349 = vpop.permute.xlu0 %2348
    %2351 = vset.pattern.permute.xlu0 16
    %2352 = vperm.xlu0 %2351, %v36
    %v2353 = vpop.permute.xlu0 %2352
    %2355 = vset.pattern.permute.xlu0 16
    %2356 = vperm.xlu0 %2355, %v37
    %v2357 = vpop.permute.xlu0 %2356
    %2359 = vset.pattern.permute.xlu0 16
    %2360 = vperm.xlu0 %2359, %v38
    %v2361 = vpop.permute.xlu0 %2360
    %2363 = vset.pattern.permute.xlu0 16
    %2364 = vperm.xlu0 %2363, %v39
    %v2365 = vpop.permute.xlu0 %2364
    %2367 = vset.pattern.permute.xlu0 16
    %2368 = vperm.xlu0 %2367, %v40
    %v2369 = vpop.permute.xlu0 %2368
    %2371 = vset.pattern.permute.xlu0 16
    %2372 = vperm.xlu0 %2371, %v41
    %v2373 = vpop.permute.xlu0 %2372
    %2375 = vset.pattern.permute.xlu0 16
    %2376 = vperm.xlu0 %2375, %v42
    %v2377 = vpop.permute.xlu0 %2376
    %2379 = vset.pattern.permute.xlu0 16
    %2380 = vperm.xlu0 %2379, %v43
    %v2381 = vpop.permute.xlu0 %2380
    %2383 = vset.pattern.permute.xlu0 16
    %2384 = vperm.xlu0 %2383, %v44
    %v2385 = vpop.permute.xlu0 %2384
    %2387 = vset.pattern.permute.xlu0 16
    %2388 = vperm.xlu0 %2387, %v45
    %v2389 = vpop.permute.xlu0 %2388
    %2391 = vset.pattern.permute.xlu0 16
    %2392 = vperm.xlu0 %2391, %v46
    %v2393 = vpop.permute.xlu0 %2392
    %2395 = vset.pattern.permute.xlu0 16
    %2396 = vperm.xlu0 %2395, %v47
    %v2397 = vpop.permute.xlu0 %2396
    %v2399 = vmul.f32 %v2319, %v2337
    %v2400 = vmul.f32 %v2320, %v2341
    %v2401 = vmul.f32 %v2321, %v2345
    %v2402 = vmul.f32 %v2322, %v2349
    %v2403 = vmul.f32 %v2323, %v2353
    %v2404 = vmul.f32 %v2324, %v2357
    %v2405 = vmul.f32 %v2325, %v2361
    %v2406 = vmul.f32 %v2326, %v2365
    %v2407 = vmul.f32 %v2327, %v2369
    %v2408 = vmul.f32 %v2328, %v2373
    %v2409 = vmul.f32 %v2329, %v2377
    %v2410 = vmul.f32 %v2330, %v2381
    %v2411 = vmul.f32 %v2331, %v2385
    %v2412 = vmul.f32 %v2332, %v2389
    %v2413 = vmul.f32 %v2333, %v2393
    %v2414 = vmul.f32 %v2334, %v2397
    %v2415 = vadd.f32 %v2399, %v2400
    %v2416 = vadd.f32 %v2415, %v2401
    %v2417 = vadd.f32 %v2416, %v2402
    %v2418 = vrot.slane %v2417, 4
    %v2419 = vadd.f32 %v2417, %v2418
    %v2420 = vrot.slane %v2419, 2
    %v2421 = vadd.f32 %v2419, %v2420
    %v2422 = vrot.slane %v2421, 1
    %v2423 = vadd.f32 %v2421, %v2422
    %v2424 = vadd.f32 %v2403, %v2404
    %v2425 = vadd.f32 %v2424, %v2405
    %v2426 = vadd.f32 %v2425, %v2406
    %v2427 = vrot.slane %v2426, 4
    %v2428 = vadd.f32 %v2426, %v2427
    %v2429 = vrot.slane %v2428, 2
    %v2430 = vadd.f32 %v2428, %v2429
    %v2431 = vrot.slane %v2430, 1
    %v2432 = vadd.f32 %v2430, %v2431
    %v2433 = vadd.f32 %v2407, %v2408
    %v2434 = vadd.f32 %v2433, %v2409
    %v2435 = vadd.f32 %v2434, %v2410
    %v2436 = vrot.slane %v2435, 4
    %v2437 = vadd.f32 %v2435, %v2436
    %v2438 = vrot.slane %v2437, 2
    %v2439 = vadd.f32 %v2437, %v2438
    %v2440 = vrot.slane %v2439, 1
    %v2441 = vadd.f32 %v2439, %v2440
    %v2442 = vadd.f32 %v2411, %v2412
    %v2443 = vadd.f32 %v2442, %v2413
    %v2444 = vadd.f32 %v2443, %v2414
    %v2445 = vrot.slane %v2444, 4
    %v2446 = vadd.f32 %v2444, %v2445
    %v2447 = vrot.slane %v2446, 2
    %v2448 = vadd.f32 %v2446, %v2447
    %v2449 = vrot.slane %v2448, 1
    %v2450 = vadd.f32 %v2448, %v2449
    %vm2451 = vcmask 1040384
    %v2452 = vsel %vm2451, %v2423, %v2432
    %vm2453 = vcmask 1041408
    %v2454 = vsel %vm2453, %v2452, %v2441
    %vm2455 = vcmask 1042432
    %v2456 = vsel %vm2455, %v2454, %v2450
    %2457 = vrot.lane.b32.xlu0 %v32, 111
    %v2458 = vpop.permute.xlu0 %2457
    %s2459 = vtos %v2458
    %v2460 = vstv %s2459
    %v2462 = vadd.f32 %v2456, %v2460
    %2463 = vst [vmem:[#allocation5] sm:$0xf] %v2462
    // Predicated region
    $region18: #{tpu_custom_call.1} parent=1 // pred_check
      _
    $region19: #{tpu_custom_call.1} parent=1 // pred_check_branch
      %2465 = sbr.rel (0) target = $region21
    $region20: #{tpu_custom_call.1} parent=1 // pred_region
      %s2467 = ssub.s32 64, 64
      %2468 = vsyncadd [#allocation4], %s2467
      %s2470 = sshll.u32 [#allocation5], 4
      %s2471 = int_to_ptr.vmem [resolvable:$true] %s2470
      %2473 = dma.vmem_to_hbm [thread:$0]  %s2471, 64, %s3, [#allocation4]
    $region21: #{tpu_custom_call.1} parent=1 // pred_fallthru
      _
    // Predicated region
    $region22: #{tpu_custom_call.1} parent=1 // pred_check
      _
    $region23: #{tpu_custom_call.1} parent=1 // pred_check_branch
      %2475 = sbr.rel (0) target = $region25
    $region24: #{tpu_custom_call.1} parent=1 // pred_region
      %2476 = dma.done [#allocation4], 64
    $region25: #{tpu_custom_call.1} parent=1 // pred_fallthru
      _
    %2477 = vsyncpa [#allocation3], 1
    %2478 = vsyncpa [#allocation4], 1

</llo_original>
